<compile_context>
chip_gen: v6e
topology: v6e:2x2x1
jax: 0.10.0
libtpu: 0.0.40
codegen_flags: <defaults>
</compile_context>

<pallas_src>
import jax
import jax.numpy as jnp
from jax import lax
from jax.experimental import pallas as pl
from jax.experimental.pallas import tpu as pltpu


# ----------------------------------------------------------------------------
# Hyperparameters (synthetic, small, consistent with the module's __init__)
# ----------------------------------------------------------------------------
BATCH       = 8    # batch_size (fills the 8-sublane vreg dimension)
SEQ         = 8    # max_seq_len
EMB_DIM     = 32   # encoder_embedding_dim (tp_gst_use_bert = False)
HIDDEN_DIM  = 32   # tpse_gru_hidden_state_dim
FC_LAYERS   = 2    # tpse_fc_layers  (>= 2 branch: Linear+ReLU, Linear+Tanh)
FC_DIM      = 32   # tpse_fc_layer_dim
TOKEN_DIM   = 16   # token_embedding_size


# ----------------------------------------------------------------------------
# Pallas kernel: full TPSE forward (GRU final hidden state + FC stack)
# ----------------------------------------------------------------------------
def tpse_kernel(x_ref,            # (T*B, E)  time-major flat encoder outputs
                w_ih_ref,         # (E, 3H)   GRU input weights, gates [r|z|n]
                w_hh_ref,         # (H, 3H)   GRU hidden weights, gates [r|z|n]
                b_ih_ref,         # (1, 3H)
                b_hh_ref,         # (1, 3H)
                w1_ref,           # (H, FC_DIM)
                b1_ref,           # (1, FC_DIM)
                w2_ref,           # (FC_DIM, TOKEN_DIM)
                b2_ref,           # (1, TOKEN_DIM)
                out_ref):         # (B, TOKEN_DIM)
    B = out_ref.shape[0]
    H = w_hh_ref.shape[0]
    T = x_ref.shape[0] // B

    # --- Hoisted input projection: all timesteps in one MXU matmul ----------
    gi_all = jnp.dot(x_ref[...], w_ih_ref[...],
                     preferred_element_type=jnp.float32) + b_ih_ref[...]   # (T*B, 3H)

    # --- Hidden-weight operands stay resident across the recurrence ---------
    w_hh = w_hh_ref[...]                                                   # (H, 3H)
    b_hh = b_hh_ref[...]                                                   # (1, 3H)

    # --- GRU recurrence, fully unrolled, h register-resident -----------------
    h = jnp.zeros((B, H), jnp.float32)
    for t in range(T):                         # static trip count -> unrolled
        gi = gi_all[t * B:(t + 1) * B, :]      # static sublane-tile slice (B, 3H)
        gh = jnp.dot(h, w_hh, preferred_element_type=jnp.float32) + b_hh   # (B, 3H)

        # one sigmoid over the joint [r|z] lanes, then static lane slices
        rz = jax.nn.sigmoid(gi[:, 0:2 * H] + gh[:, 0:2 * H])
        r = rz[:, 0:H]
        z = rz[:, H:2 * H]
        n = jnp.tanh(gi[:, 2 * H:3 * H] + r * gh[:, 2 * H:3 * H])
        h = (1.0 - z) * n + z * h

    # --- FC stack: Linear -> ReLU -> Linear -> Tanh  (fc_layers == 2) --------
    h1 = jnp.dot(h, w1_ref[...], preferred_element_type=jnp.float32) + b1_ref[...]
    h1 = jnp.maximum(h1, 0.0)
    h2 = jnp.dot(h1, w2_ref[...], preferred_element_type=jnp.float32) + b2_ref[...]
    out_ref[...] = jnp.tanh(h2)


# ----------------------------------------------------------------------------
# Wrapper
# ----------------------------------------------------------------------------
def tpse_forward(x_btE, params):
    """x_btE: (B, T, E) like the PyTorch module (batch_first=True)."""
    B, T, E = x_btE.shape
    # Time-major, flattened: row t*B + b holds (timestep t, batch b).
    x_flat = jnp.transpose(x_btE, (1, 0, 2)).reshape(T * B, E)

    w_ih, w_hh, b_ih, b_hh, w1, b1, w2, b2 = params
    H = w_hh.shape[0]

    full = lambda shape: pl.BlockSpec(shape, lambda i: (0,) * len(shape))

    return pl.pallas_call(
        tpse_kernel,
        out_shape=jax.ShapeDtypeStruct((B, TOKEN_DIM), jnp.float32),
        grid_spec=pl.GridSpec(
            grid=(1,),
            in_specs=[
                full((T * B, E)),
                full((E, 3 * H)),
                full((H, 3 * H)),
                full((1, 3 * H)),
                full((1, 3 * H)),
                full((H, FC_DIM)),
                full((1, FC_DIM)),
                full((FC_DIM, TOKEN_DIM)),
                full((1, TOKEN_DIM)),
            ],
            out_specs=full((B, TOKEN_DIM)),
        ),
        compiler_params=pltpu.CompilerParams(
            dimension_semantics=("arbitrary",)),
    )(x_flat, w_ih, w_hh, b_ih, b_hh, w1, b1, w2, b2)


# ----------------------------------------------------------------------------
# Deterministic parameter init (PyTorch-like: GRU uniform(-1/sqrt(H), 1/sqrt(H)),
# LinearNorm = xavier_uniform weights, zero bias)
# ----------------------------------------------------------------------------
def init_params(key):
    H, E = HIDDEN_DIM, EMB_DIM
    ks = jax.random.split(key, 6)
    bound = 1.0 / jnp.sqrt(H)

    # GRU weights stored transposed: (in_features, 3H), gate order [r|z|n]
    w_ih = jax.random.uniform(ks[0], (E, 3 * H), jnp.float32, -bound, bound)
    w_hh = jax.random.uniform(ks[1], (H, 3 * H), jnp.float32, -bound, bound)
    b_ih = jax.random.uniform(ks[2], (1, 3 * H), jnp.float32, -bound, bound)
    b_hh = jax.random.uniform(ks[3], (1, 3 * H), jnp.float32, -bound, bound)

    def xavier(k, fan_in, fan_out):
        lim = jnp.sqrt(6.0 / (fan_in + fan_out))
        return jax.random.uniform(k, (fan_in, fan_out), jnp.float32, -lim, lim)

    w1 = xavier(ks[4], H, FC_DIM)
    b1 = jnp.zeros((1, FC_DIM), jnp.float32)
    w2 = xavier(ks[5], FC_DIM, TOKEN_DIM)
    b2 = jnp.zeros((1, TOKEN_DIM), jnp.float32)

    return (w_ih, w_hh, b_ih, b_hh, w1, b1, w2, b2)


# ----------------------------------------------------------------------------
# Pure-JAX reference (for correctness check)
# ----------------------------------------------------------------------------
def tpse_reference(x_btE, params):
    w_ih, w_hh, b_ih, b_hh, w1, b1, w2, b2 = params
    H = w_hh.shape[0]
    B = x_btE.shape[0]

    def gru_step(h, x_t):
        gi = x_t @ w_ih + b_ih
        gh = h @ w_hh + b_hh
        r = jax.nn.sigmoid(gi[:, :H] + gh[:, :H])
        z = jax.nn.sigmoid(gi[:, H:2 * H] + gh[:, H:2 * H])
        n = jnp.tanh(gi[:, 2 * H:] + r * gh[:, 2 * H:])
        h_new = (1.0 - z) * n + z * h
        return h_new, None

    h0 = jnp.zeros((B, H), jnp.float32)
    x_tbE = jnp.transpose(x_btE, (1, 0, 2))
    h_n, _ = lax.scan(gru_step, h0, x_tbE)

    h1 = jnp.maximum(h_n @ w1 + b1, 0.0)
    return jnp.tanh(h1 @ w2 + b2)


# ----------------------------------------------------------------------------
if __name__ == "__main__":
    key = jax.random.PRNGKey(0)
    k_x, k_p = jax.random.split(key)

    x = jax.random.normal(k_x, (BATCH, SEQ, EMB_DIM), jnp.float32)
    params = init_params(k_p)

    out = tpse_forward(x, params)
    out = jax.block_until_ready(out)

    ref = tpse_reference(x, params)
    assert out.shape == (BATCH, TOKEN_DIM), out.shape
    assert jnp.allclose(out, ref, atol=1e-5, rtol=1e-5), "mismatch vs reference"

    print("KERNEL_OK")
</pallas_src>

<mosaic_0001>
module attributes {stable_mosaic.version = 11 : i64} {
  func.func @tpse_kernel(%arg0: i32, %arg1: memref<64x32xf32, #tpu.memory_space<vmem>>, %arg2: memref<32x96xf32, #tpu.memory_space<vmem>>, %arg3: memref<32x96xf32, #tpu.memory_space<vmem>>, %arg4: memref<1x96xf32, #tpu.memory_space<vmem>>, %arg5: memref<1x96xf32, #tpu.memory_space<vmem>>, %arg6: memref<32x32xf32, #tpu.memory_space<vmem>>, %arg7: memref<1x32xf32, #tpu.memory_space<vmem>>, %arg8: memref<32x16xf32, #tpu.memory_space<vmem>>, %arg9: memref<1x16xf32, #tpu.memory_space<vmem>>, %arg10: memref<8x16xf32, #tpu.memory_space<vmem>>) attributes {dimension_semantics = [#tpu.dimension_semantics<arbitrary>], iteration_bounds = array<i64: 1>, scalar_prefetch = 0 : i64, scratch_operands = 0 : i64, tpu.core_type = #tpu.core_type<tc>, window_params = [{pipeline_mode = #tpu.pipeline_mode<synchronous>, transform_indices = @transform_0, window_bounds = array<i64: 64, 32>}, {pipeline_mode = #tpu.pipeline_mode<synchronous>, transform_indices = @transform_1, window_bounds = array<i64: 32, 96>}, {pipeline_mode = #tpu.pipeline_mode<synchronous>, transform_indices = @transform_2, window_bounds = array<i64: 32, 96>}, {pipeline_mode = #tpu.pipeline_mode<synchronous>, transform_indices = @transform_3, window_bounds = array<i64: 1, 96>}, {pipeline_mode = #tpu.pipeline_mode<synchronous>, transform_indices = @transform_4, window_bounds = array<i64: 1, 96>}, {pipeline_mode = #tpu.pipeline_mode<synchronous>, transform_indices = @transform_5, window_bounds = array<i64: 32, 32>}, {pipeline_mode = #tpu.pipeline_mode<synchronous>, transform_indices = @transform_6, window_bounds = array<i64: 1, 32>}, {pipeline_mode = #tpu.pipeline_mode<synchronous>, transform_indices = @transform_7, window_bounds = array<i64: 32, 16>}, {pipeline_mode = #tpu.pipeline_mode<synchronous>, transform_indices = @transform_8, window_bounds = array<i64: 1, 16>}, {pipeline_mode = #tpu.pipeline_mode<synchronous>, transform_indices = @transform_9, window_bounds = array<i64: 8, 16>}]} {
    %c0 = arith.constant 0 : index
    %c0_0 = arith.constant 0 : index
    %0 = vector.load %arg1[%c0, %c0_0] : memref<64x32xf32, #tpu.memory_space<vmem>>, vector<64x32xf32>
    %c0_1 = arith.constant 0 : index
    %c0_2 = arith.constant 0 : index
    %1 = vector.load %arg2[%c0_1, %c0_2] : memref<32x96xf32, #tpu.memory_space<vmem>>, vector<32x96xf32>
    %cst = arith.constant dense<0.000000e+00> : vector<64x96xf32>
    %2 = tpu.matmul %0, %1, %cst {dimension_numbers = #tpu.dot_dimension_numbers<[1], [0], [0], [1], [0, 0, 1, 1], [], []>} : vector<64x32xf32>, vector<32x96xf32>, vector<64x96xf32> -> vector<64x96xf32>
    %c0_3 = arith.constant 0 : index
    %c0_4 = arith.constant 0 : index
    %3 = vector.load %arg4[%c0_3, %c0_4] : memref<1x96xf32, #tpu.memory_space<vmem>>, vector<1x96xf32>
    %4 = vector.broadcast %3 : vector<1x96xf32> to vector<64x96xf32>
    %5 = arith.addf %2, %4 : vector<64x96xf32>
    %c0_5 = arith.constant 0 : index
    %c0_6 = arith.constant 0 : index
    %6 = vector.load %arg3[%c0_5, %c0_6] : memref<32x96xf32, #tpu.memory_space<vmem>>, vector<32x96xf32>
    %c0_7 = arith.constant 0 : index
    %c0_8 = arith.constant 0 : index
    %7 = vector.load %arg5[%c0_7, %c0_8] : memref<1x96xf32, #tpu.memory_space<vmem>>, vector<1x96xf32>
    %cst_9 = arith.constant 0.000000e+00 : f32
    %8 = vector.broadcast %cst_9 : f32 to vector<8x32xf32>
    %9 = vector.extract_strided_slice %5 {offsets = [0, 0], sizes = [8, 96], strides = [1, 1]} : vector<64x96xf32> to vector<8x96xf32>
    %cst_10 = arith.constant dense<0.000000e+00> : vector<8x96xf32>
    %10 = tpu.matmul %8, %6, %cst_10 {dimension_numbers = #tpu.dot_dimension_numbers<[1], [0], [0], [1], [0, 0, 1, 1], [], []>} : vector<8x32xf32>, vector<32x96xf32>, vector<8x96xf32> -> vector<8x96xf32>
    %11 = vector.broadcast %7 : vector<1x96xf32> to vector<8x96xf32>
    %12 = arith.addf %10, %11 : vector<8x96xf32>
    %13 = vector.extract_strided_slice %9 {offsets = [0, 0], sizes = [8, 64], strides = [1, 1]} : vector<8x96xf32> to vector<8x64xf32>
    %14 = vector.extract_strided_slice %12 {offsets = [0, 0], sizes = [8, 64], strides = [1, 1]} : vector<8x96xf32> to vector<8x64xf32>
    %15 = arith.addf %13, %14 : vector<8x64xf32>
    %16 = arith.negf %15 : vector<8x64xf32>
    %17 = math.exp %16 : vector<8x64xf32>
    %cst_11 = arith.constant 1.000000e+00 : f32
    %18 = vector.broadcast %cst_11 : f32 to vector<8x64xf32>
    %19 = arith.addf %18, %17 : vector<8x64xf32>
    %20 = arith.divf %18, %19 : vector<8x64xf32>
    %21 = vector.extract_strided_slice %20 {offsets = [0, 0], sizes = [8, 32], strides = [1, 1]} : vector<8x64xf32> to vector<8x32xf32>
    %22 = vector.extract_strided_slice %20 {offsets = [0, 32], sizes = [8, 32], strides = [1, 1]} : vector<8x64xf32> to vector<8x32xf32>
    %23 = vector.extract_strided_slice %9 {offsets = [0, 64], sizes = [8, 32], strides = [1, 1]} : vector<8x96xf32> to vector<8x32xf32>
    %24 = vector.extract_strided_slice %12 {offsets = [0, 64], sizes = [8, 32], strides = [1, 1]} : vector<8x96xf32> to vector<8x32xf32>
    %25 = arith.mulf %21, %24 : vector<8x32xf32>
    %26 = arith.addf %23, %25 : vector<8x32xf32>
    %27 = math.tanh %26 : vector<8x32xf32>
    %cst_12 = arith.constant 1.000000e+00 : f32
    %28 = vector.broadcast %cst_12 : f32 to vector<8x32xf32>
    %29 = arith.subf %28, %22 : vector<8x32xf32>
    %30 = arith.mulf %29, %27 : vector<8x32xf32>
    %31 = arith.mulf %22, %8 : vector<8x32xf32>
    %32 = arith.addf %30, %31 : vector<8x32xf32>
    %33 = vector.extract_strided_slice %5 {offsets = [8, 0], sizes = [8, 96], strides = [1, 1]} : vector<64x96xf32> to vector<8x96xf32>
    %cst_13 = arith.constant dense<0.000000e+00> : vector<8x96xf32>
    %34 = tpu.matmul %32, %6, %cst_13 {dimension_numbers = #tpu.dot_dimension_numbers<[1], [0], [0], [1], [0, 0, 1, 1], [], []>} : vector<8x32xf32>, vector<32x96xf32>, vector<8x96xf32> -> vector<8x96xf32>
    %35 = vector.broadcast %7 : vector<1x96xf32> to vector<8x96xf32>
    %36 = arith.addf %34, %35 : vector<8x96xf32>
    %37 = vector.extract_strided_slice %33 {offsets = [0, 0], sizes = [8, 64], strides = [1, 1]} : vector<8x96xf32> to vector<8x64xf32>
    %38 = vector.extract_strided_slice %36 {offsets = [0, 0], sizes = [8, 64], strides = [1, 1]} : vector<8x96xf32> to vector<8x64xf32>
    %39 = arith.addf %37, %38 : vector<8x64xf32>
    %40 = arith.negf %39 : vector<8x64xf32>
    %41 = math.exp %40 : vector<8x64xf32>
    %cst_14 = arith.constant 1.000000e+00 : f32
    %42 = vector.broadcast %cst_14 : f32 to vector<8x64xf32>
    %43 = arith.addf %42, %41 : vector<8x64xf32>
    %44 = arith.divf %42, %43 : vector<8x64xf32>
    %45 = vector.extract_strided_slice %44 {offsets = [0, 0], sizes = [8, 32], strides = [1, 1]} : vector<8x64xf32> to vector<8x32xf32>
    %46 = vector.extract_strided_slice %44 {offsets = [0, 32], sizes = [8, 32], strides = [1, 1]} : vector<8x64xf32> to vector<8x32xf32>
    %47 = vector.extract_strided_slice %33 {offsets = [0, 64], sizes = [8, 32], strides = [1, 1]} : vector<8x96xf32> to vector<8x32xf32>
    %48 = vector.extract_strided_slice %36 {offsets = [0, 64], sizes = [8, 32], strides = [1, 1]} : vector<8x96xf32> to vector<8x32xf32>
    %49 = arith.mulf %45, %48 : vector<8x32xf32>
    %50 = arith.addf %47, %49 : vector<8x32xf32>
    %51 = math.tanh %50 : vector<8x32xf32>
    %cst_15 = arith.constant 1.000000e+00 : f32
    %52 = vector.broadcast %cst_15 : f32 to vector<8x32xf32>
    %53 = arith.subf %52, %46 : vector<8x32xf32>
    %54 = arith.mulf %53, %51 : vector<8x32xf32>
    %55 = arith.mulf %46, %32 : vector<8x32xf32>
    %56 = arith.addf %54, %55 : vector<8x32xf32>
    %57 = vector.extract_strided_slice %5 {offsets = [16, 0], sizes = [8, 96], strides = [1, 1]} : vector<64x96xf32> to vector<8x96xf32>
    %cst_16 = arith.constant dense<0.000000e+00> : vector<8x96xf32>
    %58 = tpu.matmul %56, %6, %cst_16 {dimension_numbers = #tpu.dot_dimension_numbers<[1], [0], [0], [1], [0, 0, 1, 1], [], []>} : vector<8x32xf32>, vector<32x96xf32>, vector<8x96xf32> -> vector<8x96xf32>
    %59 = vector.broadcast %7 : vector<1x96xf32> to vector<8x96xf32>
    %60 = arith.addf %58, %59 : vector<8x96xf32>
    %61 = vector.extract_strided_slice %57 {offsets = [0, 0], sizes = [8, 64], strides = [1, 1]} : vector<8x96xf32> to vector<8x64xf32>
    %62 = vector.extract_strided_slice %60 {offsets = [0, 0], sizes = [8, 64], strides = [1, 1]} : vector<8x96xf32> to vector<8x64xf32>
    %63 = arith.addf %61, %62 : vector<8x64xf32>
    %64 = arith.negf %63 : vector<8x64xf32>
    %65 = math.exp %64 : vector<8x64xf32>
    %cst_17 = arith.constant 1.000000e+00 : f32
    %66 = vector.broadcast %cst_17 : f32 to vector<8x64xf32>
    %67 = arith.addf %66, %65 : vector<8x64xf32>
    %68 = arith.divf %66, %67 : vector<8x64xf32>
    %69 = vector.extract_strided_slice %68 {offsets = [0, 0], sizes = [8, 32], strides = [1, 1]} : vector<8x64xf32> to vector<8x32xf32>
    %70 = vector.extract_strided_slice %68 {offsets = [0, 32], sizes = [8, 32], strides = [1, 1]} : vector<8x64xf32> to vector<8x32xf32>
    %71 = vector.extract_strided_slice %57 {offsets = [0, 64], sizes = [8, 32], strides = [1, 1]} : vector<8x96xf32> to vector<8x32xf32>
    %72 = vector.extract_strided_slice %60 {offsets = [0, 64], sizes = [8, 32], strides = [1, 1]} : vector<8x96xf32> to vector<8x32xf32>
    %73 = arith.mulf %69, %72 : vector<8x32xf32>
    %74 = arith.addf %71, %73 : vector<8x32xf32>
    %75 = math.tanh %74 : vector<8x32xf32>
    %cst_18 = arith.constant 1.000000e+00 : f32
    %76 = vector.broadcast %cst_18 : f32 to vector<8x32xf32>
    %77 = arith.subf %76, %70 : vector<8x32xf32>
    %78 = arith.mulf %77, %75 : vector<8x32xf32>
    %79 = arith.mulf %70, %56 : vector<8x32xf32>
    %80 = arith.addf %78, %79 : vector<8x32xf32>
    %81 = vector.extract_strided_slice %5 {offsets = [24, 0], sizes = [8, 96], strides = [1, 1]} : vector<64x96xf32> to vector<8x96xf32>
    %cst_19 = arith.constant dense<0.000000e+00> : vector<8x96xf32>
    %82 = tpu.matmul %80, %6, %cst_19 {dimension_numbers = #tpu.dot_dimension_numbers<[1], [0], [0], [1], [0, 0, 1, 1], [], []>} : vector<8x32xf32>, vector<32x96xf32>, vector<8x96xf32> -> vector<8x96xf32>
    %83 = vector.broadcast %7 : vector<1x96xf32> to vector<8x96xf32>
    %84 = arith.addf %82, %83 : vector<8x96xf32>
    %85 = vector.extract_strided_slice %81 {offsets = [0, 0], sizes = [8, 64], strides = [1, 1]} : vector<8x96xf32> to vector<8x64xf32>
    %86 = vector.extract_strided_slice %84 {offsets = [0, 0], sizes = [8, 64], strides = [1, 1]} : vector<8x96xf32> to vector<8x64xf32>
    %87 = arith.addf %85, %86 : vector<8x64xf32>
    %88 = arith.negf %87 : vector<8x64xf32>
    %89 = math.exp %88 : vector<8x64xf32>
    %cst_20 = arith.constant 1.000000e+00 : f32
    %90 = vector.broadcast %cst_20 : f32 to vector<8x64xf32>
    %91 = arith.addf %90, %89 : vector<8x64xf32>
    %92 = arith.divf %90, %91 : vector<8x64xf32>
    %93 = vector.extract_strided_slice %92 {offsets = [0, 0], sizes = [8, 32], strides = [1, 1]} : vector<8x64xf32> to vector<8x32xf32>
    %94 = vector.extract_strided_slice %92 {offsets = [0, 32], sizes = [8, 32], strides = [1, 1]} : vector<8x64xf32> to vector<8x32xf32>
    %95 = vector.extract_strided_slice %81 {offsets = [0, 64], sizes = [8, 32], strides = [1, 1]} : vector<8x96xf32> to vector<8x32xf32>
    %96 = vector.extract_strided_slice %84 {offsets = [0, 64], sizes = [8, 32], strides = [1, 1]} : vector<8x96xf32> to vector<8x32xf32>
    %97 = arith.mulf %93, %96 : vector<8x32xf32>
    %98 = arith.addf %95, %97 : vector<8x32xf32>
    %99 = math.tanh %98 : vector<8x32xf32>
    %cst_21 = arith.constant 1.000000e+00 : f32
    %100 = vector.broadcast %cst_21 : f32 to vector<8x32xf32>
    %101 = arith.subf %100, %94 : vector<8x32xf32>
    %102 = arith.mulf %101, %99 : vector<8x32xf32>
    %103 = arith.mulf %94, %80 : vector<8x32xf32>
    %104 = arith.addf %102, %103 : vector<8x32xf32>
    %105 = vector.extract_strided_slice %5 {offsets = [32, 0], sizes = [8, 96], strides = [1, 1]} : vector<64x96xf32> to vector<8x96xf32>
    %cst_22 = arith.constant dense<0.000000e+00> : vector<8x96xf32>
    %106 = tpu.matmul %104, %6, %cst_22 {dimension_numbers = #tpu.dot_dimension_numbers<[1], [0], [0], [1], [0, 0, 1, 1], [], []>} : vector<8x32xf32>, vector<32x96xf32>, vector<8x96xf32> -> vector<8x96xf32>
    %107 = vector.broadcast %7 : vector<1x96xf32> to vector<8x96xf32>
    %108 = arith.addf %106, %107 : vector<8x96xf32>
    %109 = vector.extract_strided_slice %105 {offsets = [0, 0], sizes = [8, 64], strides = [1, 1]} : vector<8x96xf32> to vector<8x64xf32>
    %110 = vector.extract_strided_slice %108 {offsets = [0, 0], sizes = [8, 64], strides = [1, 1]} : vector<8x96xf32> to vector<8x64xf32>
    %111 = arith.addf %109, %110 : vector<8x64xf32>
    %112 = arith.negf %111 : vector<8x64xf32>
    %113 = math.exp %112 : vector<8x64xf32>
    %cst_23 = arith.constant 1.000000e+00 : f32
    %114 = vector.broadcast %cst_23 : f32 to vector<8x64xf32>
    %115 = arith.addf %114, %113 : vector<8x64xf32>
    %116 = arith.divf %114, %115 : vector<8x64xf32>
    %117 = vector.extract_strided_slice %116 {offsets = [0, 0], sizes = [8, 32], strides = [1, 1]} : vector<8x64xf32> to vector<8x32xf32>
    %118 = vector.extract_strided_slice %116 {offsets = [0, 32], sizes = [8, 32], strides = [1, 1]} : vector<8x64xf32> to vector<8x32xf32>
    %119 = vector.extract_strided_slice %105 {offsets = [0, 64], sizes = [8, 32], strides = [1, 1]} : vector<8x96xf32> to vector<8x32xf32>
    %120 = vector.extract_strided_slice %108 {offsets = [0, 64], sizes = [8, 32], strides = [1, 1]} : vector<8x96xf32> to vector<8x32xf32>
    %121 = arith.mulf %117, %120 : vector<8x32xf32>
    %122 = arith.addf %119, %121 : vector<8x32xf32>
    %123 = math.tanh %122 : vector<8x32xf32>
    %cst_24 = arith.constant 1.000000e+00 : f32
    %124 = vector.broadcast %cst_24 : f32 to vector<8x32xf32>
    %125 = arith.subf %124, %118 : vector<8x32xf32>
    %126 = arith.mulf %125, %123 : vector<8x32xf32>
    %127 = arith.mulf %118, %104 : vector<8x32xf32>
    %128 = arith.addf %126, %127 : vector<8x32xf32>
    %129 = vector.extract_strided_slice %5 {offsets = [40, 0], sizes = [8, 96], strides = [1, 1]} : vector<64x96xf32> to vector<8x96xf32>
    %cst_25 = arith.constant dense<0.000000e+00> : vector<8x96xf32>
    %130 = tpu.matmul %128, %6, %cst_25 {dimension_numbers = #tpu.dot_dimension_numbers<[1], [0], [0], [1], [0, 0, 1, 1], [], []>} : vector<8x32xf32>, vector<32x96xf32>, vector<8x96xf32> -> vector<8x96xf32>
    %131 = vector.broadcast %7 : vector<1x96xf32> to vector<8x96xf32>
    %132 = arith.addf %130, %131 : vector<8x96xf32>
    %133 = vector.extract_strided_slice %129 {offsets = [0, 0], sizes = [8, 64], strides = [1, 1]} : vector<8x96xf32> to vector<8x64xf32>
    %134 = vector.extract_strided_slice %132 {offsets = [0, 0], sizes = [8, 64], strides = [1, 1]} : vector<8x96xf32> to vector<8x64xf32>
    %135 = arith.addf %133, %134 : vector<8x64xf32>
    %136 = arith.negf %135 : vector<8x64xf32>
    %137 = math.exp %136 : vector<8x64xf32>
    %cst_26 = arith.constant 1.000000e+00 : f32
    %138 = vector.broadcast %cst_26 : f32 to vector<8x64xf32>
    %139 = arith.addf %138, %137 : vector<8x64xf32>
    %140 = arith.divf %138, %139 : vector<8x64xf32>
    %141 = vector.extract_strided_slice %140 {offsets = [0, 0], sizes = [8, 32], strides = [1, 1]} : vector<8x64xf32> to vector<8x32xf32>
    %142 = vector.extract_strided_slice %140 {offsets = [0, 32], sizes = [8, 32], strides = [1, 1]} : vector<8x64xf32> to vector<8x32xf32>
    %143 = vector.extract_strided_slice %129 {offsets = [0, 64], sizes = [8, 32], strides = [1, 1]} : vector<8x96xf32> to vector<8x32xf32>
    %144 = vector.extract_strided_slice %132 {offsets = [0, 64], sizes = [8, 32], strides = [1, 1]} : vector<8x96xf32> to vector<8x32xf32>
    %145 = arith.mulf %141, %144 : vector<8x32xf32>
    %146 = arith.addf %143, %145 : vector<8x32xf32>
    %147 = math.tanh %146 : vector<8x32xf32>
    %cst_27 = arith.constant 1.000000e+00 : f32
    %148 = vector.broadcast %cst_27 : f32 to vector<8x32xf32>
    %149 = arith.subf %148, %142 : vector<8x32xf32>
    %150 = arith.mulf %149, %147 : vector<8x32xf32>
    %151 = arith.mulf %142, %128 : vector<8x32xf32>
    %152 = arith.addf %150, %151 : vector<8x32xf32>
    %153 = vector.extract_strided_slice %5 {offsets = [48, 0], sizes = [8, 96], strides = [1, 1]} : vector<64x96xf32> to vector<8x96xf32>
    %cst_28 = arith.constant dense<0.000000e+00> : vector<8x96xf32>
    %154 = tpu.matmul %152, %6, %cst_28 {dimension_numbers = #tpu.dot_dimension_numbers<[1], [0], [0], [1], [0, 0, 1, 1], [], []>} : vector<8x32xf32>, vector<32x96xf32>, vector<8x96xf32> -> vector<8x96xf32>
    %155 = vector.broadcast %7 : vector<1x96xf32> to vector<8x96xf32>
    %156 = arith.addf %154, %155 : vector<8x96xf32>
    %157 = vector.extract_strided_slice %153 {offsets = [0, 0], sizes = [8, 64], strides = [1, 1]} : vector<8x96xf32> to vector<8x64xf32>
    %158 = vector.extract_strided_slice %156 {offsets = [0, 0], sizes = [8, 64], strides = [1, 1]} : vector<8x96xf32> to vector<8x64xf32>
    %159 = arith.addf %157, %158 : vector<8x64xf32>
    %160 = arith.negf %159 : vector<8x64xf32>
    %161 = math.exp %160 : vector<8x64xf32>
    %cst_29 = arith.constant 1.000000e+00 : f32
    %162 = vector.broadcast %cst_29 : f32 to vector<8x64xf32>
    %163 = arith.addf %162, %161 : vector<8x64xf32>
    %164 = arith.divf %162, %163 : vector<8x64xf32>
    %165 = vector.extract_strided_slice %164 {offsets = [0, 0], sizes = [8, 32], strides = [1, 1]} : vector<8x64xf32> to vector<8x32xf32>
    %166 = vector.extract_strided_slice %164 {offsets = [0, 32], sizes = [8, 32], strides = [1, 1]} : vector<8x64xf32> to vector<8x32xf32>
    %167 = vector.extract_strided_slice %153 {offsets = [0, 64], sizes = [8, 32], strides = [1, 1]} : vector<8x96xf32> to vector<8x32xf32>
    %168 = vector.extract_strided_slice %156 {offsets = [0, 64], sizes = [8, 32], strides = [1, 1]} : vector<8x96xf32> to vector<8x32xf32>
    %169 = arith.mulf %165, %168 : vector<8x32xf32>
    %170 = arith.addf %167, %169 : vector<8x32xf32>
    %171 = math.tanh %170 : vector<8x32xf32>
    %cst_30 = arith.constant 1.000000e+00 : f32
    %172 = vector.broadcast %cst_30 : f32 to vector<8x32xf32>
    %173 = arith.subf %172, %166 : vector<8x32xf32>
    %174 = arith.mulf %173, %171 : vector<8x32xf32>
    %175 = arith.mulf %166, %152 : vector<8x32xf32>
    %176 = arith.addf %174, %175 : vector<8x32xf32>
    %177 = vector.extract_strided_slice %5 {offsets = [56, 0], sizes = [8, 96], strides = [1, 1]} : vector<64x96xf32> to vector<8x96xf32>
    %cst_31 = arith.constant dense<0.000000e+00> : vector<8x96xf32>
    %178 = tpu.matmul %176, %6, %cst_31 {dimension_numbers = #tpu.dot_dimension_numbers<[1], [0], [0], [1], [0, 0, 1, 1], [], []>} : vector<8x32xf32>, vector<32x96xf32>, vector<8x96xf32> -> vector<8x96xf32>
    %179 = vector.broadcast %7 : vector<1x96xf32> to vector<8x96xf32>
    %180 = arith.addf %178, %179 : vector<8x96xf32>
    %181 = vector.extract_strided_slice %177 {offsets = [0, 0], sizes = [8, 64], strides = [1, 1]} : vector<8x96xf32> to vector<8x64xf32>
    %182 = vector.extract_strided_slice %180 {offsets = [0, 0], sizes = [8, 64], strides = [1, 1]} : vector<8x96xf32> to vector<8x64xf32>
    %183 = arith.addf %181, %182 : vector<8x64xf32>
    %184 = arith.negf %183 : vector<8x64xf32>
    %185 = math.exp %184 : vector<8x64xf32>
    %cst_32 = arith.constant 1.000000e+00 : f32
    %186 = vector.broadcast %cst_32 : f32 to vector<8x64xf32>
    %187 = arith.addf %186, %185 : vector<8x64xf32>
    %188 = arith.divf %186, %187 : vector<8x64xf32>
    %189 = vector.extract_strided_slice %188 {offsets = [0, 0], sizes = [8, 32], strides = [1, 1]} : vector<8x64xf32> to vector<8x32xf32>
    %190 = vector.extract_strided_slice %188 {offsets = [0, 32], sizes = [8, 32], strides = [1, 1]} : vector<8x64xf32> to vector<8x32xf32>
    %191 = vector.extract_strided_slice %177 {offsets = [0, 64], sizes = [8, 32], strides = [1, 1]} : vector<8x96xf32> to vector<8x32xf32>
    %192 = vector.extract_strided_slice %180 {offsets = [0, 64], sizes = [8, 32], strides = [1, 1]} : vector<8x96xf32> to vector<8x32xf32>
    %193 = arith.mulf %189, %192 : vector<8x32xf32>
    %194 = arith.addf %191, %193 : vector<8x32xf32>
    %195 = math.tanh %194 : vector<8x32xf32>
    %cst_33 = arith.constant 1.000000e+00 : f32
    %196 = vector.broadcast %cst_33 : f32 to vector<8x32xf32>
    %197 = arith.subf %196, %190 : vector<8x32xf32>
    %198 = arith.mulf %197, %195 : vector<8x32xf32>
    %199 = arith.mulf %190, %176 : vector<8x32xf32>
    %200 = arith.addf %198, %199 : vector<8x32xf32>
    %c0_34 = arith.constant 0 : index
    %c0_35 = arith.constant 0 : index
    %201 = vector.load %arg6[%c0_34, %c0_35] : memref<32x32xf32, #tpu.memory_space<vmem>>, vector<32x32xf32>
    %cst_36 = arith.constant dense<0.000000e+00> : vector<8x32xf32>
    %202 = tpu.matmul %200, %201, %cst_36 {dimension_numbers = #tpu.dot_dimension_numbers<[1], [0], [0], [1], [0, 0, 1, 1], [], []>} : vector<8x32xf32>, vector<32x32xf32>, vector<8x32xf32> -> vector<8x32xf32>
    %c0_37 = arith.constant 0 : index
    %c0_38 = arith.constant 0 : index
    %203 = vector.load %arg7[%c0_37, %c0_38] : memref<1x32xf32, #tpu.memory_space<vmem>>, vector<1x32xf32>
    %204 = vector.broadcast %203 : vector<1x32xf32> to vector<8x32xf32>
    %205 = arith.addf %202, %204 : vector<8x32xf32>
    %cst_39 = arith.constant 0.000000e+00 : f32
    %206 = vector.broadcast %cst_39 : f32 to vector<8x32xf32>
    %207 = arith.maximumf %205, %206 : vector<8x32xf32>
    %c0_40 = arith.constant 0 : index
    %c0_41 = arith.constant 0 : index
    %208 = vector.load %arg8[%c0_40, %c0_41] : memref<32x16xf32, #tpu.memory_space<vmem>>, vector<32x16xf32>
    %cst_42 = arith.constant dense<0.000000e+00> : vector<8x16xf32>
    %209 = tpu.matmul %207, %208, %cst_42 {dimension_numbers = #tpu.dot_dimension_numbers<[1], [0], [0], [1], [0, 0, 1, 1], [], []>} : vector<8x32xf32>, vector<32x16xf32>, vector<8x16xf32> -> vector<8x16xf32>
    %c0_43 = arith.constant 0 : index
    %c0_44 = arith.constant 0 : index
    %210 = vector.load %arg9[%c0_43, %c0_44] : memref<1x16xf32, #tpu.memory_space<vmem>>, vector<1x16xf32>
    %211 = vector.broadcast %210 : vector<1x16xf32> to vector<8x16xf32>
    %212 = arith.addf %209, %211 : vector<8x16xf32>
    %213 = math.tanh %212 : vector<8x16xf32>
    %c0_45 = arith.constant 0 : index
    %c0_46 = arith.constant 0 : index
    %214 = vector.load %arg10[%c0_45, %c0_46] : memref<8x16xf32, #tpu.memory_space<vmem>>, vector<8x16xf32>
    tpu.vector_store %arg10[%c0_45, %c0_46], %213 {strides = array<i32>} : memref<8x16xf32, #tpu.memory_space<vmem>>, vector<8x16xf32>,
    return
  }
  func.func @transform_0(%arg0: i32) -> (i32, i32) {
    %c0_i32 = arith.constant 0 : i32
    %c0_i32_0 = arith.constant 0 : i32
    %c0_i32_1 = arith.constant 0 : i32
    return %c0_i32, %c0_i32_0 : i32, i32
  }
  func.func @transform_1(%arg0: i32) -> (i32, i32) {
    %c0_i32 = arith.constant 0 : i32
    %c0_i32_0 = arith.constant 0 : i32
    %c0_i32_1 = arith.constant 0 : i32
    return %c0_i32, %c0_i32_0 : i32, i32
  }
  func.func @transform_2(%arg0: i32) -> (i32, i32) {
    %c0_i32 = arith.constant 0 : i32
    %c0_i32_0 = arith.constant 0 : i32
    %c0_i32_1 = arith.constant 0 : i32
    return %c0_i32, %c0_i32_0 : i32, i32
  }
  func.func @transform_3(%arg0: i32) -> (i32, i32) {
    %c0_i32 = arith.constant 0 : i32
    %c0_i32_0 = arith.constant 0 : i32
    %c0_i32_1 = arith.constant 0 : i32
    return %c0_i32, %c0_i32_0 : i32, i32
  }
  func.func @transform_4(%arg0: i32) -> (i32, i32) {
    %c0_i32 = arith.constant 0 : i32
    %c0_i32_0 = arith.constant 0 : i32
    %c0_i32_1 = arith.constant 0 : i32
    return %c0_i32, %c0_i32_0 : i32, i32
  }
  func.func @transform_5(%arg0: i32) -> (i32, i32) {
    %c0_i32 = arith.constant 0 : i32
    %c0_i32_0 = arith.constant 0 : i32
    %c0_i32_1 = arith.constant 0 : i32
    return %c0_i32, %c0_i32_0 : i32, i32
  }
  func.func @transform_6(%arg0: i32) -> (i32, i32) {
    %c0_i32 = arith.constant 0 : i32
    %c0_i32_0 = arith.constant 0 : i32
    %c0_i32_1 = arith.constant 0 : i32
    return %c0_i32, %c0_i32_0 : i32, i32
  }
  func.func @transform_7(%arg0: i32) -> (i32, i32) {
    %c0_i32 = arith.constant 0 : i32
    %c0_i32_0 = arith.constant 0 : i32
    %c0_i32_1 = arith.constant 0 : i32
    return %c0_i32, %c0_i32_0 : i32, i32
  }
  func.func @transform_8(%arg0: i32) -> (i32, i32) {
    %c0_i32 = arith.constant 0 : i32
    %c0_i32_0 = arith.constant 0 : i32
    %c0_i32_1 = arith.constant 0 : i32
    return %c0_i32, %c0_i32_0 : i32, i32
  }
  func.func @transform_9(%arg0: i32) -> (i32, i32) {
    %c0_i32 = arith.constant 0 : i32
    %c0_i32_0 = arith.constant 0 : i32
    %c0_i32_1 = arith.constant 0 : i32
    return %c0_i32, %c0_i32_0 : i32, i32
  }
}

</mosaic_0001>

<llo_original>
// kernel: tpu_custom_call.1
$region0: #{tpu_custom_call.1}
  #allocation0 [shape = 'u32[]', space=smem, size = 0x4, offset = 0x4, fixed_abs, tag = 'smem constant byte address 0x4 - core index']
  #allocation1 [shape = 'u32[144,128]{1,0:T(1,128)}', space=vmem, size = 0x12000, scoped, tag = 'internal scratch']
  %s0 = inlined_call_operand.vmem [shape: f32[64,32], index: 0, kind: input, shape index: {}]
  %s1 = inlined_call_operand.vmem [shape: f32[32,96], index: 1, kind: input, shape index: {}]
  %s2 = inlined_call_operand.vmem [shape: f32[32,96], index: 2, kind: input, shape index: {}]
  %s3 = inlined_call_operand.vmem [shape: f32[1,96], index: 3, kind: input, shape index: {}]
  %s4 = inlined_call_operand.vmem [shape: f32[1,96], index: 4, kind: input, shape index: {}]
  %s5 = inlined_call_operand.vmem [shape: f32[32,32], index: 5, kind: input, shape index: {}]
  %s6 = inlined_call_operand.vmem [shape: f32[1,32], index: 6, kind: input, shape index: {}]
  %s7 = inlined_call_operand.vmem [shape: f32[32,16], index: 7, kind: input, shape index: {}]
  %s8 = inlined_call_operand.vmem [shape: f32[1,16], index: 8, kind: input, shape index: {}]
  %s9 = inlined_call_operand.hbm [shape: f32[8,16], index: 9, kind: output, shape index: {}]
  %s10 = sld [smem:[#allocation0]]
  $region46: #{tpu_custom_call.1} parent=0
    _
  %s12 = ssub.s32 1, %s10
  %s13 = scalar_select 0, %s12, %s10
  $region1: #{tpu_custom_call.1} parent=0
    #allocation2 [shape = 'u8[4096]{0}', space=vmem, size = 0x1000, scoped, tag = 'output window, operand 0, single buffered']
    #allocation3 [shape = 's32[1]{0}', space=sflag, size = 0x4, scoped, tag = 'scoped memory for tpu_custom_call.1']
    %14 = vsyncpa [#allocation3], 0
    // Predicated region
    $region2: #{tpu_custom_call.1} parent=1 // pred_check
      _
    $region3: #{tpu_custom_call.1} parent=1 // pred_check_branch
      %16 = sbr.rel (0) target = $region5
    $region4: #{tpu_custom_call.1} parent=1 // pred_region
      _
    $region5: #{tpu_custom_call.1} parent=1 // pred_fallthru
      _
    // Predicated region
    $region6: #{tpu_custom_call.1} parent=1 // pred_check
      _
    $region7: #{tpu_custom_call.1} parent=1 // pred_check_branch
      %18 = sbr.rel (0) target = $region9
    $region8: #{tpu_custom_call.1} parent=1 // pred_region
      _
    $region9: #{tpu_custom_call.1} parent=1 // pred_fallthru
      _
    // Predicated region
    $region10: #{tpu_custom_call.1} parent=1 // pred_check
      _
    $region11: #{tpu_custom_call.1} parent=1 // pred_check_branch
      %20 = sbr.rel (0) target = $region13
    $region12: #{tpu_custom_call.1} parent=1 // pred_region
      _
    $region13: #{tpu_custom_call.1} parent=1 // pred_fallthru
      _
    // Predicated region
    $region14: #{tpu_custom_call.1} parent=1 // pred_check
      _
    $region15: #{tpu_custom_call.1} parent=1 // pred_check_branch
      %22 = sbr.rel (0) target = $region17
    $region16: #{tpu_custom_call.1} parent=1 // pred_region
      _
    $region17: #{tpu_custom_call.1} parent=1 // pred_fallthru
      _
    // Predicated region
    $region18: #{tpu_custom_call.1} parent=1 // pred_check
      _
    $region19: #{tpu_custom_call.1} parent=1 // pred_check_branch
      %24 = sbr.rel (0) target = $region21
    $region20: #{tpu_custom_call.1} parent=1 // pred_region
      _
    $region21: #{tpu_custom_call.1} parent=1 // pred_fallthru
      _
    // Predicated region
    $region22: #{tpu_custom_call.1} parent=1 // pred_check
      _
    $region23: #{tpu_custom_call.1} parent=1 // pred_check_branch
      %26 = sbr.rel (0) target = $region25
    $region24: #{tpu_custom_call.1} parent=1 // pred_region
      _
    $region25: #{tpu_custom_call.1} parent=1 // pred_fallthru
      _
    // Predicated region
    $region26: #{tpu_custom_call.1} parent=1 // pred_check
      _
    $region27: #{tpu_custom_call.1} parent=1 // pred_check_branch
      %28 = sbr.rel (0) target = $region29
    $region28: #{tpu_custom_call.1} parent=1 // pred_region
      _
    $region29: #{tpu_custom_call.1} parent=1 // pred_fallthru
      _
    // Predicated region
    $region30: #{tpu_custom_call.1} parent=1 // pred_check
      _
    $region31: #{tpu_custom_call.1} parent=1 // pred_check_branch
      %30 = sbr.rel (0) target = $region33
    $region32: #{tpu_custom_call.1} parent=1 // pred_region
      _
    $region33: #{tpu_custom_call.1} parent=1 // pred_fallthru
      _
    // Predicated region
    $region34: #{tpu_custom_call.1} parent=1 // pred_check
      _
    $region35: #{tpu_custom_call.1} parent=1 // pred_check_branch
      %32 = sbr.rel (0) target = $region37
    $region36: #{tpu_custom_call.1} parent=1 // pred_region
      _
    $region37: #{tpu_custom_call.1} parent=1 // pred_fallthru
      _
    %v33 = vld [vmem:[%s0] sm:$0xff]
    %v34 = vld [vmem:[%s0 + $0x8] sm:$0xff]
    %v35 = vld [vmem:[%s0 + $0x10] sm:$0xff]
    %v36 = vld [vmem:[%s0 + $0x18] sm:$0xff]
    %v37 = vld [vmem:[%s0 + $0x20] sm:$0xff]
    %v38 = vld [vmem:[%s0 + $0x28] sm:$0xff]
    %v39 = vld [vmem:[%s0 + $0x30] sm:$0xff]
    %v40 = vld [vmem:[%s0 + $0x38] sm:$0xff]
    %v41 = vld [vmem:[%s1] sm:$0xff]
    %v42 = vld [vmem:[%s1 + $0x8] sm:$0xff]
    %v43 = vld [vmem:[%s1 + $0x10] sm:$0xff]
    %v44 = vld [vmem:[%s1 + $0x18] sm:$0xff]
    %v45 = vld [vmem:[%s3] sm:$0x1]
    %v47 = vlaneseq
    %v48 = vshrl.u32 %v47, 7
    %v49 = vsub.s32 0, %v48
    %v50 = vrot.slane %v45, %v49
    %vm52 = vcmask 261120
    %v54 = vsel %vm52, %v33, 0
    %v57 = vsel %vm52, %v34, 0
    %v60 = vsel %vm52, %v35, 0
    %v63 = vsel %vm52, %v36, 0
    %v66 = vsel %vm52, %v37, 0
    %v69 = vsel %vm52, %v38, 0
    %v72 = vsel %vm52, %v39, 0
    %v75 = vsel %vm52, %v40, 0
    %77 = vmatprep.subr.mxu0 0.0
    %78 = vmatpush1.msra.mxu0 0.0
    %79 = vmatprep.subr.mxu0 0.0
    %80 = vmatpush1.msra.mxu0 0.0
    %81 = vmatprep.subr.mxu0 0.0
    %82 = vmatpush1.msra.mxu0 0.0
    %83 = vmatprep.subr.mxu0 0.0
    %84 = vmatpush1.msra.mxu0 0.0
    %85 = vmatprep.subr.mxu0 0.0
    %86 = vmatpush1.msra.mxu0 0.0
    %87 = vmatprep.subr.mxu0 0.0
    %88 = vmatpush1.msra.mxu0 0.0
    %89 = vmatprep.subr.mxu0 0.0
    %90 = vmatpush1.msra.mxu0 0.0
    %91 = vmatprep.subr.mxu0 0.0
    %92 = vmatpush1.msra.mxu0 0.0
    %93 = vmatprep.subr.mxu0 0.0
    %94 = vmatpush1.msra.mxu0 0.0
    %95 = vmatprep.subr.mxu0 0.0
    %96 = vmatpush1.msra.mxu0 0.0
    %97 = vmatprep.subr.mxu0 0.0
    %98 = vmatpush1.msra.mxu0 0.0
    %99 = vmatprep.subr.mxu0 0.0
    %100 = vmatpush1.msra.mxu0 0.0
    %101 = vmatprep.subr.mxu0 0.0
    %102 = vmatpush1.msra.mxu0 %v44
    %103 = vmatprep.subr.mxu0 0.0
    %104 = vmatpush1.msra.mxu0 %v43
    %105 = vmatprep.subr.mxu0 0.0
    %106 = vmatpush1.msra.mxu0 %v42
    %107 = vmatprep.subr.mxu0 0.0
    %108 = vmatpush1.msra.mxu0 %v41
    %109 = vmatprep.subr.mxu0 0.0
    %110 = vmatpush2.msra.mxu0 0.0
    %111 = vmatprep.subr.mxu0 0.0
    %112 = vmatpush2.msra.mxu0 0.0
    %113 = vmatprep.subr.mxu0 0.0
    %114 = vmatpush2.msra.mxu0 0.0
    %115 = vmatprep.subr.mxu0 0.0
    %116 = vmatpush2.msra.mxu0 0.0
    %117 = vmatprep.subr.mxu0 0.0
    %118 = vmatpush2.msra.mxu0 0.0
    %119 = vmatprep.subr.mxu0 0.0
    %120 = vmatpush2.msra.mxu0 0.0
    %121 = vmatprep.subr.mxu0 0.0
    %122 = vmatpush2.msra.mxu0 0.0
    %123 = vmatprep.subr.mxu0 0.0
    %124 = vmatpush2.msra.mxu0 0.0
    %125 = vmatprep.subr.mxu0 0.0
    %126 = vmatpush2.msra.mxu0 0.0
    %127 = vmatprep.subr.mxu0 0.0
    %128 = vmatpush2.msra.mxu0 0.0
    %129 = vmatprep.subr.mxu0 0.0
    %130 = vmatpush2.msra.mxu0 0.0
    %131 = vmatprep.subr.mxu0 0.0
    %132 = vmatpush2.msra.mxu0 0.0
    %133 = vmatprep.subr.mxu0 0.0
    %134 = vmatpush2.msra.mxu0 0.0
    %135 = vmatprep.subr.mxu0 0.0
    %136 = vmatpush2.msra.mxu0 0.0
    %137 = vmatprep.subr.mxu0 0.0
    %138 = vmatpush2.msra.mxu0 0.0
    %139 = vmatprep.subr.mxu0 0.0
    %140 = vmatpush2.msra.mxu0 0.0
    %141 = vmatprep.mubr.f32.mxu0 0.0
    %142 = vmatmul.mubr.f32.gmra.mxu0 %v54
    %v143 = vpop.f32.mrf.mxu0
    %v144 = vadd.f32 %v50, %v143
    %v145 = vpop.f32.mrf.mxu0
    %146 = vmatprep.mubr.f32.mxu0 0.0
    %147 = vmatmul.mubr.f32.gmra.mxu0 %v57
    %v148 = vpop.f32.mrf.mxu0
    %v149 = vadd.f32 %v50, %v148
    %v150 = vpop.f32.mrf.mxu0
    %151 = vmatprep.mubr.f32.mxu0 0.0
    %152 = vmatmul.mubr.f32.gmra.mxu0 %v60
    %v153 = vpop.f32.mrf.mxu0
    %v154 = vadd.f32 %v50, %v153
    %v155 = vpop.f32.mrf.mxu0
    %156 = vmatprep.mubr.f32.mxu0 0.0
    %157 = vmatmul.mubr.f32.gmra.mxu0 %v63
    %v158 = vpop.f32.mrf.mxu0
    %v159 = vadd.f32 %v50, %v158
    %v160 = vpop.f32.mrf.mxu0
    %161 = vmatprep.mubr.f32.mxu0 0.0
    %162 = vmatmul.mubr.f32.gmra.mxu0 %v66
    %v163 = vpop.f32.mrf.mxu0
    %v164 = vadd.f32 %v50, %v163
    %v165 = vpop.f32.mrf.mxu0
    %166 = vmatprep.mubr.f32.mxu0 0.0
    %167 = vmatmul.mubr.f32.gmra.mxu0 %v69
    %v168 = vpop.f32.mrf.mxu0
    %v169 = vadd.f32 %v50, %v168
    %v170 = vpop.f32.mrf.mxu0
    %171 = vmatprep.mubr.f32.mxu0 0.0
    %172 = vmatmul.mubr.f32.gmra.mxu0 %v72
    %v173 = vpop.f32.mrf.mxu0
    %v174 = vadd.f32 %v50, %v173
    %v175 = vpop.f32.mrf.mxu0
    %176 = vmatprep.mubr.f32.mxu0 0.0
    %177 = vmatmul.mubr.f32.gmra.mxu0 %v75
    %v178 = vpop.f32.mrf.mxu0
    %v179 = vadd.f32 %v50, %v178
    %v180 = vpop.f32.mrf.mxu0
    %181 = vdwg.mxu0
    %v182 = vld [vmem:[%s2] sm:$0xff]
    %v183 = vld [vmem:[%s2 + $0x8] sm:$0xff]
    %v184 = vld [vmem:[%s2 + $0x10] sm:$0xff]
    %v185 = vld [vmem:[%s2 + $0x18] sm:$0xff]
    %v186 = vld [vmem:[%s4] sm:$0x1]
    %v188 = vlaneseq
    %v189 = vshrl.u32 %v188, 7
    %v190 = vsub.s32 0, %v189
    %v191 = vrot.slane %v186, %v190
    %v194 = vsel %vm52, 0.0, 0
    %196 = vmatprep.subr.mxu0 0.0
    %197 = vmatpush1.msra.mxu0 0.0
    %198 = vmatprep.subr.mxu0 0.0
    %199 = vmatpush1.msra.mxu0 0.0
    %200 = vmatprep.subr.mxu0 0.0
    %201 = vmatpush1.msra.mxu0 0.0
    %202 = vmatprep.subr.mxu0 0.0
    %203 = vmatpush1.msra.mxu0 0.0
    %204 = vmatprep.subr.mxu0 0.0
    %205 = vmatpush1.msra.mxu0 0.0
    %206 = vmatprep.subr.mxu0 0.0
    %207 = vmatpush1.msra.mxu0 0.0
    %208 = vmatprep.subr.mxu0 0.0
    %209 = vmatpush1.msra.mxu0 0.0
    %210 = vmatprep.subr.mxu0 0.0
    %211 = vmatpush1.msra.mxu0 0.0
    %212 = vmatprep.subr.mxu0 0.0
    %213 = vmatpush1.msra.mxu0 0.0
    %214 = vmatprep.subr.mxu0 0.0
    %215 = vmatpush1.msra.mxu0 0.0
    %216 = vmatprep.subr.mxu0 0.0
    %217 = vmatpush1.msra.mxu0 0.0
    %218 = vmatprep.subr.mxu0 0.0
    %219 = vmatpush1.msra.mxu0 0.0
    %220 = vmatprep.subr.mxu0 0.0
    %221 = vmatpush1.msra.mxu0 %v185
    %222 = vmatprep.subr.mxu0 0.0
    %223 = vmatpush1.msra.mxu0 %v184
    %224 = vmatprep.subr.mxu0 0.0
    %225 = vmatpush1.msra.mxu0 %v183
    %226 = vmatprep.subr.mxu0 0.0
    %227 = vmatpush1.msra.mxu0 %v182
    %228 = vmatprep.subr.mxu0 0.0
    %229 = vmatpush2.msra.mxu0 0.0
    %230 = vmatprep.subr.mxu0 0.0
    %231 = vmatpush2.msra.mxu0 0.0
    %232 = vmatprep.subr.mxu0 0.0
    %233 = vmatpush2.msra.mxu0 0.0
    %234 = vmatprep.subr.mxu0 0.0
    %235 = vmatpush2.msra.mxu0 0.0
    %236 = vmatprep.subr.mxu0 0.0
    %237 = vmatpush2.msra.mxu0 0.0
    %238 = vmatprep.subr.mxu0 0.0
    %239 = vmatpush2.msra.mxu0 0.0
    %240 = vmatprep.subr.mxu0 0.0
    %241 = vmatpush2.msra.mxu0 0.0
    %242 = vmatprep.subr.mxu0 0.0
    %243 = vmatpush2.msra.mxu0 0.0
    %244 = vmatprep.subr.mxu0 0.0
    %245 = vmatpush2.msra.mxu0 0.0
    %246 = vmatprep.subr.mxu0 0.0
    %247 = vmatpush2.msra.mxu0 0.0
    %248 = vmatprep.subr.mxu0 0.0
    %249 = vmatpush2.msra.mxu0 0.0
    %250 = vmatprep.subr.mxu0 0.0
    %251 = vmatpush2.msra.mxu0 0.0
    %252 = vmatprep.subr.mxu0 0.0
    %253 = vmatpush2.msra.mxu0 0.0
    %254 = vmatprep.subr.mxu0 0.0
    %255 = vmatpush2.msra.mxu0 0.0
    %256 = vmatprep.subr.mxu0 0.0
    %257 = vmatpush2.msra.mxu0 0.0
    %258 = vmatprep.subr.mxu0 0.0
    %259 = vmatpush2.msra.mxu0 0.0
    %260 = vmatprep.mubr.f32.mxu0 0.0
    %261 = vmatmul.mubr.f32.gmra.mxu0 %v194
    %v262 = vpop.f32.mrf.mxu0
    %v263 = vadd.f32 %v191, %v262
    %v264 = vpop.f32.mrf.mxu0
    %265 = vdwg.mxu0
    %v266 = vadd.f32 %v144, %v263
    %v267 = vxor.u32 %v266, 2147483648
    %v268 = vmul.f32 %v267, 1.442695
    %v269 = vpow.pop %v268
    %v270 = vadd.f32 %v269, 1.0
    %v271 = vrcp.pop %v270
    %v272 = vmul.f32 1.0, %v271
    %274 = vrot.lane.b32.xlu0 %v263, 64
    %v275 = vpop.permute.xlu0 %274
    %v277 = vmul.f32 %v272, %v275
    %279 = vrot.lane.b32.xlu0 %v277, 64
    %v280 = vpop.permute.xlu0 %279
    %v282 = vadd.f32 %v144, %v280
    %v283 = vtanh.pop %v282
    %v284 = vsub.f32 1.0, %v272
    %286 = vrot.lane.b32.xlu0 %v283, 96
    %v287 = vpop.permute.xlu0 %286
    %v289 = vmul.f32 %v284, %v287
    %v290 = vmul.f32 %v272, 0.0
    %v291 = vadd.f32 %v289, %v290
    %293 = vrot.lane.b32.xlu0 %v291, 96
    %v294 = vpop.permute.xlu0 %293
    %v295 = vsel %vm52, %v294, 0
    %297 = vmatprep.subr.mxu0 0.0
    %298 = vmatpush1.msra.mxu0 0.0
    %299 = vmatprep.subr.mxu0 0.0
    %300 = vmatpush1.msra.mxu0 0.0
    %301 = vmatprep.subr.mxu0 0.0
    %302 = vmatpush1.msra.mxu0 0.0
    %303 = vmatprep.subr.mxu0 0.0
    %304 = vmatpush1.msra.mxu0 0.0
    %305 = vmatprep.subr.mxu0 0.0
    %306 = vmatpush1.msra.mxu0 0.0
    %307 = vmatprep.subr.mxu0 0.0
    %308 = vmatpush1.msra.mxu0 0.0
    %309 = vmatprep.subr.mxu0 0.0
    %310 = vmatpush1.msra.mxu0 0.0
    %311 = vmatprep.subr.mxu0 0.0
    %312 = vmatpush1.msra.mxu0 0.0
    %313 = vmatprep.subr.mxu0 0.0
    %314 = vmatpush1.msra.mxu0 0.0
    %315 = vmatprep.subr.mxu0 0.0
    %316 = vmatpush1.msra.mxu0 0.0
    %317 = vmatprep.subr.mxu0 0.0
    %318 = vmatpush1.msra.mxu0 0.0
    %319 = vmatprep.subr.mxu0 0.0
    %320 = vmatpush1.msra.mxu0 0.0
    %321 = vmatprep.subr.mxu0 0.0
    %322 = vmatpush1.msra.mxu0 %v185
    %323 = vmatprep.subr.mxu0 0.0
    %324 = vmatpush1.msra.mxu0 %v184
    %325 = vmatprep.subr.mxu0 0.0
    %326 = vmatpush1.msra.mxu0 %v183
    %327 = vmatprep.subr.mxu0 0.0
    %328 = vmatpush1.msra.mxu0 %v182
    %329 = vmatprep.subr.mxu0 0.0
    %330 = vmatpush2.msra.mxu0 0.0
    %331 = vmatprep.subr.mxu0 0.0
    %332 = vmatpush2.msra.mxu0 0.0
    %333 = vmatprep.subr.mxu0 0.0
    %334 = vmatpush2.msra.mxu0 0.0
    %335 = vmatprep.subr.mxu0 0.0
    %336 = vmatpush2.msra.mxu0 0.0
    %337 = vmatprep.subr.mxu0 0.0
    %338 = vmatpush2.msra.mxu0 0.0
    %339 = vmatprep.subr.mxu0 0.0
    %340 = vmatpush2.msra.mxu0 0.0
    %341 = vmatprep.subr.mxu0 0.0
    %342 = vmatpush2.msra.mxu0 0.0
    %343 = vmatprep.subr.mxu0 0.0
    %344 = vmatpush2.msra.mxu0 0.0
    %345 = vmatprep.subr.mxu0 0.0
    %346 = vmatpush2.msra.mxu0 0.0
    %347 = vmatprep.subr.mxu0 0.0
    %348 = vmatpush2.msra.mxu0 0.0
    %349 = vmatprep.subr.mxu0 0.0
    %350 = vmatpush2.msra.mxu0 0.0
    %351 = vmatprep.subr.mxu0 0.0
    %352 = vmatpush2.msra.mxu0 0.0
    %353 = vmatprep.subr.mxu0 0.0
    %354 = vmatpush2.msra.mxu0 0.0
    %355 = vmatprep.subr.mxu0 0.0
    %356 = vmatpush2.msra.mxu0 0.0
    %357 = vmatprep.subr.mxu0 0.0
    %358 = vmatpush2.msra.mxu0 0.0
    %359 = vmatprep.subr.mxu0 0.0
    %360 = vmatpush2.msra.mxu0 0.0
    %361 = vmatprep.mubr.f32.mxu0 0.0
    %362 = vmatmul.mubr.f32.gmra.mxu0 %v295
    %v363 = vpop.f32.mrf.mxu0
    %v364 = vadd.f32 %v191, %v363
    %v365 = vpop.f32.mrf.mxu0
    %366 = vdwg.mxu0
    %v367 = vadd.f32 %v149, %v364
    %v368 = vxor.u32 %v367, 2147483648
    %v369 = vmul.f32 %v368, 1.442695
    %v370 = vpow.pop %v369
    %v371 = vadd.f32 %v370, 1.0
    %v372 = vrcp.pop %v371
    %v373 = vmul.f32 1.0, %v372
    %375 = vrot.lane.b32.xlu0 %v364, 64
    %v376 = vpop.permute.xlu0 %375
    %v378 = vmul.f32 %v373, %v376
    %380 = vrot.lane.b32.xlu0 %v378, 64
    %v381 = vpop.permute.xlu0 %380
    %v383 = vadd.f32 %v149, %v381
    %v384 = vtanh.pop %v383
    %v385 = vsub.f32 1.0, %v373
    %387 = vrot.lane.b32.xlu0 %v384, 96
    %v388 = vpop.permute.xlu0 %387
    %v390 = vmul.f32 %v385, %v388
    %v391 = vmul.f32 %v373, %v291
    %v392 = vadd.f32 %v390, %v391
    %394 = vrot.lane.b32.xlu0 %v392, 96
    %v395 = vpop.permute.xlu0 %394
    %v396 = vsel %vm52, %v395, 0
    %398 = vmatprep.subr.mxu0 0.0
    %399 = vmatpush1.msra.mxu0 0.0
    %400 = vmatprep.subr.mxu0 0.0
    %401 = vmatpush1.msra.mxu0 0.0
    %402 = vmatprep.subr.mxu0 0.0
    %403 = vmatpush1.msra.mxu0 0.0
    %404 = vmatprep.subr.mxu0 0.0
    %405 = vmatpush1.msra.mxu0 0.0
    %406 = vmatprep.subr.mxu0 0.0
    %407 = vmatpush1.msra.mxu0 0.0
    %408 = vmatprep.subr.mxu0 0.0
    %409 = vmatpush1.msra.mxu0 0.0
    %410 = vmatprep.subr.mxu0 0.0
    %411 = vmatpush1.msra.mxu0 0.0
    %412 = vmatprep.subr.mxu0 0.0
    %413 = vmatpush1.msra.mxu0 0.0
    %414 = vmatprep.subr.mxu0 0.0
    %415 = vmatpush1.msra.mxu0 0.0
    %416 = vmatprep.subr.mxu0 0.0
    %417 = vmatpush1.msra.mxu0 0.0
    %418 = vmatprep.subr.mxu0 0.0
    %419 = vmatpush1.msra.mxu0 0.0
    %420 = vmatprep.subr.mxu0 0.0
    %421 = vmatpush1.msra.mxu0 0.0
    %422 = vmatprep.subr.mxu0 0.0
    %423 = vmatpush1.msra.mxu0 %v185
    %424 = vmatprep.subr.mxu0 0.0
    %425 = vmatpush1.msra.mxu0 %v184
    %426 = vmatprep.subr.mxu0 0.0
    %427 = vmatpush1.msra.mxu0 %v183
    %428 = vmatprep.subr.mxu0 0.0
    %429 = vmatpush1.msra.mxu0 %v182
    %430 = vmatprep.subr.mxu0 0.0
    %431 = vmatpush2.msra.mxu0 0.0
    %432 = vmatprep.subr.mxu0 0.0
    %433 = vmatpush2.msra.mxu0 0.0
    %434 = vmatprep.subr.mxu0 0.0
    %435 = vmatpush2.msra.mxu0 0.0
    %436 = vmatprep.subr.mxu0 0.0
    %437 = vmatpush2.msra.mxu0 0.0
    %438 = vmatprep.subr.mxu0 0.0
    %439 = vmatpush2.msra.mxu0 0.0
    %440 = vmatprep.subr.mxu0 0.0
    %441 = vmatpush2.msra.mxu0 0.0
    %442 = vmatprep.subr.mxu0 0.0
    %443 = vmatpush2.msra.mxu0 0.0
    %444 = vmatprep.subr.mxu0 0.0
    %445 = vmatpush2.msra.mxu0 0.0
    %446 = vmatprep.subr.mxu0 0.0
    %447 = vmatpush2.msra.mxu0 0.0
    %448 = vmatprep.subr.mxu0 0.0
    %449 = vmatpush2.msra.mxu0 0.0
    %450 = vmatprep.subr.mxu0 0.0
    %451 = vmatpush2.msra.mxu0 0.0
    %452 = vmatprep.subr.mxu0 0.0
    %453 = vmatpush2.msra.mxu0 0.0
    %454 = vmatprep.subr.mxu0 0.0
    %455 = vmatpush2.msra.mxu0 0.0
    %456 = vmatprep.subr.mxu0 0.0
    %457 = vmatpush2.msra.mxu0 0.0
    %458 = vmatprep.subr.mxu0 0.0
    %459 = vmatpush2.msra.mxu0 0.0
    %460 = vmatprep.subr.mxu0 0.0
    %461 = vmatpush2.msra.mxu0 0.0
    %462 = vmatprep.mubr.f32.mxu0 0.0
    %463 = vmatmul.mubr.f32.gmra.mxu0 %v396
    %v464 = vpop.f32.mrf.mxu0
    %v465 = vadd.f32 %v191, %v464
    %v466 = vpop.f32.mrf.mxu0
    %467 = vdwg.mxu0
    %v468 = vadd.f32 %v154, %v465
    %v469 = vxor.u32 %v468, 2147483648
    %v470 = vmul.f32 %v469, 1.442695
    %v471 = vpow.pop %v470
    %v472 = vadd.f32 %v471, 1.0
    %v473 = vrcp.pop %v472
    %v474 = vmul.f32 1.0, %v473
    %476 = vrot.lane.b32.xlu0 %v465, 64
    %v477 = vpop.permute.xlu0 %476
    %v479 = vmul.f32 %v474, %v477
    %481 = vrot.lane.b32.xlu0 %v479, 64
    %v482 = vpop.permute.xlu0 %481
    %v484 = vadd.f32 %v154, %v482
    %v485 = vtanh.pop %v484
    %v486 = vsub.f32 1.0, %v474
    %488 = vrot.lane.b32.xlu0 %v485, 96
    %v489 = vpop.permute.xlu0 %488
    %v491 = vmul.f32 %v486, %v489
    %v492 = vmul.f32 %v474, %v392
    %v493 = vadd.f32 %v491, %v492
    %495 = vrot.lane.b32.xlu0 %v493, 96
    %v496 = vpop.permute.xlu0 %495
    %v497 = vsel %vm52, %v496, 0
    %499 = vmatprep.subr.mxu0 0.0
    %500 = vmatpush1.msra.mxu0 0.0
    %501 = vmatprep.subr.mxu0 0.0
    %502 = vmatpush1.msra.mxu0 0.0
    %503 = vmatprep.subr.mxu0 0.0
    %504 = vmatpush1.msra.mxu0 0.0
    %505 = vmatprep.subr.mxu0 0.0
    %506 = vmatpush1.msra.mxu0 0.0
    %507 = vmatprep.subr.mxu0 0.0
    %508 = vmatpush1.msra.mxu0 0.0
    %509 = vmatprep.subr.mxu0 0.0
    %510 = vmatpush1.msra.mxu0 0.0
    %511 = vmatprep.subr.mxu0 0.0
    %512 = vmatpush1.msra.mxu0 0.0
    %513 = vmatprep.subr.mxu0 0.0
    %514 = vmatpush1.msra.mxu0 0.0
    %515 = vmatprep.subr.mxu0 0.0
    %516 = vmatpush1.msra.mxu0 0.0
    %517 = vmatprep.subr.mxu0 0.0
    %518 = vmatpush1.msra.mxu0 0.0
    %519 = vmatprep.subr.mxu0 0.0
    %520 = vmatpush1.msra.mxu0 0.0
    %521 = vmatprep.subr.mxu0 0.0
    %522 = vmatpush1.msra.mxu0 0.0
    %523 = vmatprep.subr.mxu0 0.0
    %524 = vmatpush1.msra.mxu0 %v185
    %525 = vmatprep.subr.mxu0 0.0
    %526 = vmatpush1.msra.mxu0 %v184
    %527 = vmatprep.subr.mxu0 0.0
    %528 = vmatpush1.msra.mxu0 %v183
    %529 = vmatprep.subr.mxu0 0.0
    %530 = vmatpush1.msra.mxu0 %v182
    %531 = vmatprep.subr.mxu0 0.0
    %532 = vmatpush2.msra.mxu0 0.0
    %533 = vmatprep.subr.mxu0 0.0
    %534 = vmatpush2.msra.mxu0 0.0
    %535 = vmatprep.subr.mxu0 0.0
    %536 = vmatpush2.msra.mxu0 0.0
    %537 = vmatprep.subr.mxu0 0.0
    %538 = vmatpush2.msra.mxu0 0.0
    %539 = vmatprep.subr.mxu0 0.0
    %540 = vmatpush2.msra.mxu0 0.0
    %541 = vmatprep.subr.mxu0 0.0
    %542 = vmatpush2.msra.mxu0 0.0
    %543 = vmatprep.subr.mxu0 0.0
    %544 = vmatpush2.msra.mxu0 0.0
    %545 = vmatprep.subr.mxu0 0.0
    %546 = vmatpush2.msra.mxu0 0.0
    %547 = vmatprep.subr.mxu0 0.0
    %548 = vmatpush2.msra.mxu0 0.0
    %549 = vmatprep.subr.mxu0 0.0
    %550 = vmatpush2.msra.mxu0 0.0
    %551 = vmatprep.subr.mxu0 0.0
    %552 = vmatpush2.msra.mxu0 0.0
    %553 = vmatprep.subr.mxu0 0.0
    %554 = vmatpush2.msra.mxu0 0.0
    %555 = vmatprep.subr.mxu0 0.0
    %556 = vmatpush2.msra.mxu0 0.0
    %557 = vmatprep.subr.mxu0 0.0
    %558 = vmatpush2.msra.mxu0 0.0
    %559 = vmatprep.subr.mxu0 0.0
    %560 = vmatpush2.msra.mxu0 0.0
    %561 = vmatprep.subr.mxu0 0.0
    %562 = vmatpush2.msra.mxu0 0.0
    %563 = vmatprep.mubr.f32.mxu0 0.0
    %564 = vmatmul.mubr.f32.gmra.mxu0 %v497
    %v565 = vpop.f32.mrf.mxu0
    %v566 = vadd.f32 %v191, %v565
    %v567 = vpop.f32.mrf.mxu0
    %568 = vdwg.mxu0
    %v569 = vadd.f32 %v159, %v566
    %v570 = vxor.u32 %v569, 2147483648
    %v571 = vmul.f32 %v570, 1.442695
    %v572 = vpow.pop %v571
    %v573 = vadd.f32 %v572, 1.0
    %v574 = vrcp.pop %v573
    %v575 = vmul.f32 1.0, %v574
    %577 = vrot.lane.b32.xlu0 %v566, 64
    %v578 = vpop.permute.xlu0 %577
    %v580 = vmul.f32 %v575, %v578
    %582 = vrot.lane.b32.xlu0 %v580, 64
    %v583 = vpop.permute.xlu0 %582
    %v585 = vadd.f32 %v159, %v583
    %v586 = vtanh.pop %v585
    %v587 = vsub.f32 1.0, %v575
    %589 = vrot.lane.b32.xlu0 %v586, 96
    %v590 = vpop.permute.xlu0 %589
    %v592 = vmul.f32 %v587, %v590
    %v593 = vmul.f32 %v575, %v493
    %v594 = vadd.f32 %v592, %v593
    %596 = vrot.lane.b32.xlu0 %v594, 96
    %v597 = vpop.permute.xlu0 %596
    %v598 = vsel %vm52, %v597, 0
    %600 = vmatprep.subr.mxu0 0.0
    %601 = vmatpush1.msra.mxu0 0.0
    %602 = vmatprep.subr.mxu0 0.0
    %603 = vmatpush1.msra.mxu0 0.0
    %604 = vmatprep.subr.mxu0 0.0
    %605 = vmatpush1.msra.mxu0 0.0
    %606 = vmatprep.subr.mxu0 0.0
    %607 = vmatpush1.msra.mxu0 0.0
    %608 = vmatprep.subr.mxu0 0.0
    %609 = vmatpush1.msra.mxu0 0.0
    %610 = vmatprep.subr.mxu0 0.0
    %611 = vmatpush1.msra.mxu0 0.0
    %612 = vmatprep.subr.mxu0 0.0
    %613 = vmatpush1.msra.mxu0 0.0
    %614 = vmatprep.subr.mxu0 0.0
    %615 = vmatpush1.msra.mxu0 0.0
    %616 = vmatprep.subr.mxu0 0.0
    %617 = vmatpush1.msra.mxu0 0.0
    %618 = vmatprep.subr.mxu0 0.0
    %619 = vmatpush1.msra.mxu0 0.0
    %620 = vmatprep.subr.mxu0 0.0
    %621 = vmatpush1.msra.mxu0 0.0
    %622 = vmatprep.subr.mxu0 0.0
    %623 = vmatpush1.msra.mxu0 0.0
    %624 = vmatprep.subr.mxu0 0.0
    %625 = vmatpush1.msra.mxu0 %v185
    %626 = vmatprep.subr.mxu0 0.0
    %627 = vmatpush1.msra.mxu0 %v184
    %628 = vmatprep.subr.mxu0 0.0
    %629 = vmatpush1.msra.mxu0 %v183
    %630 = vmatprep.subr.mxu0 0.0
    %631 = vmatpush1.msra.mxu0 %v182
    %632 = vmatprep.subr.mxu0 0.0
    %633 = vmatpush2.msra.mxu0 0.0
    %634 = vmatprep.subr.mxu0 0.0
    %635 = vmatpush2.msra.mxu0 0.0
    %636 = vmatprep.subr.mxu0 0.0
    %637 = vmatpush2.msra.mxu0 0.0
    %638 = vmatprep.subr.mxu0 0.0
    %639 = vmatpush2.msra.mxu0 0.0
    %640 = vmatprep.subr.mxu0 0.0
    %641 = vmatpush2.msra.mxu0 0.0
    %642 = vmatprep.subr.mxu0 0.0
    %643 = vmatpush2.msra.mxu0 0.0
    %644 = vmatprep.subr.mxu0 0.0
    %645 = vmatpush2.msra.mxu0 0.0
    %646 = vmatprep.subr.mxu0 0.0
    %647 = vmatpush2.msra.mxu0 0.0
    %648 = vmatprep.subr.mxu0 0.0
    %649 = vmatpush2.msra.mxu0 0.0
    %650 = vmatprep.subr.mxu0 0.0
    %651 = vmatpush2.msra.mxu0 0.0
    %652 = vmatprep.subr.mxu0 0.0
    %653 = vmatpush2.msra.mxu0 0.0
    %654 = vmatprep.subr.mxu0 0.0
    %655 = vmatpush2.msra.mxu0 0.0
    %656 = vmatprep.subr.mxu0 0.0
    %657 = vmatpush2.msra.mxu0 0.0
    %658 = vmatprep.subr.mxu0 0.0
    %659 = vmatpush2.msra.mxu0 0.0
    %660 = vmatprep.subr.mxu0 0.0
    %661 = vmatpush2.msra.mxu0 0.0
    %662 = vmatprep.subr.mxu0 0.0
    %663 = vmatpush2.msra.mxu0 0.0
    %664 = vmatprep.mubr.f32.mxu0 0.0
    %665 = vmatmul.mubr.f32.gmra.mxu0 %v598
    %v666 = vpop.f32.mrf.mxu0
    %v667 = vadd.f32 %v191, %v666
    %v668 = vpop.f32.mrf.mxu0
    %669 = vdwg.mxu0
    %v670 = vadd.f32 %v164, %v667
    %v671 = vxor.u32 %v670, 2147483648
    %v672 = vmul.f32 %v671, 1.442695
    %v673 = vpow.pop %v672
    %v674 = vadd.f32 %v673, 1.0
    %v675 = vrcp.pop %v674
    %v676 = vmul.f32 1.0, %v675
    %678 = vrot.lane.b32.xlu0 %v667, 64
    %v679 = vpop.permute.xlu0 %678
    %v681 = vmul.f32 %v676, %v679
    %683 = vrot.lane.b32.xlu0 %v681, 64
    %v684 = vpop.permute.xlu0 %683
    %v686 = vadd.f32 %v164, %v684
    %v687 = vtanh.pop %v686
    %v688 = vsub.f32 1.0, %v676
    %690 = vrot.lane.b32.xlu0 %v687, 96
    %v691 = vpop.permute.xlu0 %690
    %v693 = vmul.f32 %v688, %v691
    %v694 = vmul.f32 %v676, %v594
    %v695 = vadd.f32 %v693, %v694
    %697 = vrot.lane.b32.xlu0 %v695, 96
    %v698 = vpop.permute.xlu0 %697
    %v699 = vsel %vm52, %v698, 0
    %701 = vmatprep.subr.mxu0 0.0
    %702 = vmatpush1.msra.mxu0 0.0
    %703 = vmatprep.subr.mxu0 0.0
    %704 = vmatpush1.msra.mxu0 0.0
    %705 = vmatprep.subr.mxu0 0.0
    %706 = vmatpush1.msra.mxu0 0.0
    %707 = vmatprep.subr.mxu0 0.0
    %708 = vmatpush1.msra.mxu0 0.0
    %709 = vmatprep.subr.mxu0 0.0
    %710 = vmatpush1.msra.mxu0 0.0
    %711 = vmatprep.subr.mxu0 0.0
    %712 = vmatpush1.msra.mxu0 0.0
    %713 = vmatprep.subr.mxu0 0.0
    %714 = vmatpush1.msra.mxu0 0.0
    %715 = vmatprep.subr.mxu0 0.0
    %716 = vmatpush1.msra.mxu0 0.0
    %717 = vmatprep.subr.mxu0 0.0
    %718 = vmatpush1.msra.mxu0 0.0
    %719 = vmatprep.subr.mxu0 0.0
    %720 = vmatpush1.msra.mxu0 0.0
    %721 = vmatprep.subr.mxu0 0.0
    %722 = vmatpush1.msra.mxu0 0.0
    %723 = vmatprep.subr.mxu0 0.0
    %724 = vmatpush1.msra.mxu0 0.0
    %725 = vmatprep.subr.mxu0 0.0
    %726 = vmatpush1.msra.mxu0 %v185
    %727 = vmatprep.subr.mxu0 0.0
    %728 = vmatpush1.msra.mxu0 %v184
    %729 = vmatprep.subr.mxu0 0.0
    %730 = vmatpush1.msra.mxu0 %v183
    %731 = vmatprep.subr.mxu0 0.0
    %732 = vmatpush1.msra.mxu0 %v182
    %733 = vmatprep.subr.mxu0 0.0
    %734 = vmatpush2.msra.mxu0 0.0
    %735 = vmatprep.subr.mxu0 0.0
    %736 = vmatpush2.msra.mxu0 0.0
    %737 = vmatprep.subr.mxu0 0.0
    %738 = vmatpush2.msra.mxu0 0.0
    %739 = vmatprep.subr.mxu0 0.0
    %740 = vmatpush2.msra.mxu0 0.0
    %741 = vmatprep.subr.mxu0 0.0
    %742 = vmatpush2.msra.mxu0 0.0
    %743 = vmatprep.subr.mxu0 0.0
    %744 = vmatpush2.msra.mxu0 0.0
    %745 = vmatprep.subr.mxu0 0.0
    %746 = vmatpush2.msra.mxu0 0.0
    %747 = vmatprep.subr.mxu0 0.0
    %748 = vmatpush2.msra.mxu0 0.0
    %749 = vmatprep.subr.mxu0 0.0
    %750 = vmatpush2.msra.mxu0 0.0
    %751 = vmatprep.subr.mxu0 0.0
    %752 = vmatpush2.msra.mxu0 0.0
    %753 = vmatprep.subr.mxu0 0.0
    %754 = vmatpush2.msra.mxu0 0.0
    %755 = vmatprep.subr.mxu0 0.0
    %756 = vmatpush2.msra.mxu0 0.0
    %757 = vmatprep.subr.mxu0 0.0
    %758 = vmatpush2.msra.mxu0 0.0
    %759 = vmatprep.subr.mxu0 0.0
    %760 = vmatpush2.msra.mxu0 0.0
    %761 = vmatprep.subr.mxu0 0.0
    %762 = vmatpush2.msra.mxu0 0.0
    %763 = vmatprep.subr.mxu0 0.0
    %764 = vmatpush2.msra.mxu0 0.0
    %765 = vmatprep.mubr.f32.mxu0 0.0
    %766 = vmatmul.mubr.f32.gmra.mxu0 %v699
    %v767 = vpop.f32.mrf.mxu0
    %v768 = vadd.f32 %v191, %v767
    %v769 = vpop.f32.mrf.mxu0
    %770 = vdwg.mxu0
    %v771 = vadd.f32 %v169, %v768
    %v772 = vxor.u32 %v771, 2147483648
    %v773 = vmul.f32 %v772, 1.442695
    %v774 = vpow.pop %v773
    %v775 = vadd.f32 %v774, 1.0
    %v776 = vrcp.pop %v775
    %v777 = vmul.f32 1.0, %v776
    %779 = vrot.lane.b32.xlu0 %v768, 64
    %v780 = vpop.permute.xlu0 %779
    %v782 = vmul.f32 %v777, %v780
    %784 = vrot.lane.b32.xlu0 %v782, 64
    %v785 = vpop.permute.xlu0 %784
    %v787 = vadd.f32 %v169, %v785
    %v788 = vtanh.pop %v787
    %v789 = vsub.f32 1.0, %v777
    %791 = vrot.lane.b32.xlu0 %v788, 96
    %v792 = vpop.permute.xlu0 %791
    %v794 = vmul.f32 %v789, %v792
    %v795 = vmul.f32 %v777, %v695
    %v796 = vadd.f32 %v794, %v795
    %798 = vrot.lane.b32.xlu0 %v796, 96
    %v799 = vpop.permute.xlu0 %798
    %v800 = vsel %vm52, %v799, 0
    %802 = vmatprep.subr.mxu0 0.0
    %803 = vmatpush1.msra.mxu0 0.0
    %804 = vmatprep.subr.mxu0 0.0
    %805 = vmatpush1.msra.mxu0 0.0
    %806 = vmatprep.subr.mxu0 0.0
    %807 = vmatpush1.msra.mxu0 0.0
    %808 = vmatprep.subr.mxu0 0.0
    %809 = vmatpush1.msra.mxu0 0.0
    %810 = vmatprep.subr.mxu0 0.0
    %811 = vmatpush1.msra.mxu0 0.0
    %812 = vmatprep.subr.mxu0 0.0
    %813 = vmatpush1.msra.mxu0 0.0
    %814 = vmatprep.subr.mxu0 0.0
    %815 = vmatpush1.msra.mxu0 0.0
    %816 = vmatprep.subr.mxu0 0.0
    %817 = vmatpush1.msra.mxu0 0.0
    %818 = vmatprep.subr.mxu0 0.0
    %819 = vmatpush1.msra.mxu0 0.0
    %820 = vmatprep.subr.mxu0 0.0
    %821 = vmatpush1.msra.mxu0 0.0
    %822 = vmatprep.subr.mxu0 0.0
    %823 = vmatpush1.msra.mxu0 0.0
    %824 = vmatprep.subr.mxu0 0.0
    %825 = vmatpush1.msra.mxu0 0.0
    %826 = vmatprep.subr.mxu0 0.0
    %827 = vmatpush1.msra.mxu0 %v185
    %828 = vmatprep.subr.mxu0 0.0
    %829 = vmatpush1.msra.mxu0 %v184
    %830 = vmatprep.subr.mxu0 0.0
    %831 = vmatpush1.msra.mxu0 %v183
    %832 = vmatprep.subr.mxu0 0.0
    %833 = vmatpush1.msra.mxu0 %v182
    %834 = vmatprep.subr.mxu0 0.0
    %835 = vmatpush2.msra.mxu0 0.0
    %836 = vmatprep.subr.mxu0 0.0
    %837 = vmatpush2.msra.mxu0 0.0
    %838 = vmatprep.subr.mxu0 0.0
    %839 = vmatpush2.msra.mxu0 0.0
    %840 = vmatprep.subr.mxu0 0.0
    %841 = vmatpush2.msra.mxu0 0.0
    %842 = vmatprep.subr.mxu0 0.0
    %843 = vmatpush2.msra.mxu0 0.0
    %844 = vmatprep.subr.mxu0 0.0
    %845 = vmatpush2.msra.mxu0 0.0
    %846 = vmatprep.subr.mxu0 0.0
    %847 = vmatpush2.msra.mxu0 0.0
    %848 = vmatprep.subr.mxu0 0.0
    %849 = vmatpush2.msra.mxu0 0.0
    %850 = vmatprep.subr.mxu0 0.0
    %851 = vmatpush2.msra.mxu0 0.0
    %852 = vmatprep.subr.mxu0 0.0
    %853 = vmatpush2.msra.mxu0 0.0
    %854 = vmatprep.subr.mxu0 0.0
    %855 = vmatpush2.msra.mxu0 0.0
    %856 = vmatprep.subr.mxu0 0.0
    %857 = vmatpush2.msra.mxu0 0.0
    %858 = vmatprep.subr.mxu0 0.0
    %859 = vmatpush2.msra.mxu0 0.0
    %860 = vmatprep.subr.mxu0 0.0
    %861 = vmatpush2.msra.mxu0 0.0
    %862 = vmatprep.subr.mxu0 0.0
    %863 = vmatpush2.msra.mxu0 0.0
    %864 = vmatprep.subr.mxu0 0.0
    %865 = vmatpush2.msra.mxu0 0.0
    %866 = vmatprep.mubr.f32.mxu0 0.0
    %867 = vmatmul.mubr.f32.gmra.mxu0 %v800
    %v868 = vpop.f32.mrf.mxu0
    %v869 = vadd.f32 %v191, %v868
    %v870 = vpop.f32.mrf.mxu0
    %871 = vdwg.mxu0
    %v872 = vadd.f32 %v174, %v869
    %v873 = vxor.u32 %v872, 2147483648
    %v874 = vmul.f32 %v873, 1.442695
    %v875 = vpow.pop %v874
    %v876 = vadd.f32 %v875, 1.0
    %v877 = vrcp.pop %v876
    %v878 = vmul.f32 1.0, %v877
    %880 = vrot.lane.b32.xlu0 %v869, 64
    %v881 = vpop.permute.xlu0 %880
    %v883 = vmul.f32 %v878, %v881
    %885 = vrot.lane.b32.xlu0 %v883, 64
    %v886 = vpop.permute.xlu0 %885
    %v888 = vadd.f32 %v174, %v886
    %v889 = vtanh.pop %v888
    %v890 = vsub.f32 1.0, %v878
    %892 = vrot.lane.b32.xlu0 %v889, 96
    %v893 = vpop.permute.xlu0 %892
    %v895 = vmul.f32 %v890, %v893
    %v896 = vmul.f32 %v878, %v796
    %v897 = vadd.f32 %v895, %v896
    %899 = vrot.lane.b32.xlu0 %v897, 96
    %v900 = vpop.permute.xlu0 %899
    %v901 = vsel %vm52, %v900, 0
    %903 = vmatprep.subr.mxu0 0.0
    %904 = vmatpush1.msra.mxu0 0.0
    %905 = vmatprep.subr.mxu0 0.0
    %906 = vmatpush1.msra.mxu0 0.0
    %907 = vmatprep.subr.mxu0 0.0
    %908 = vmatpush1.msra.mxu0 0.0
    %909 = vmatprep.subr.mxu0 0.0
    %910 = vmatpush1.msra.mxu0 0.0
    %911 = vmatprep.subr.mxu0 0.0
    %912 = vmatpush1.msra.mxu0 0.0
    %913 = vmatprep.subr.mxu0 0.0
    %914 = vmatpush1.msra.mxu0 0.0
    %915 = vmatprep.subr.mxu0 0.0
    %916 = vmatpush1.msra.mxu0 0.0
    %917 = vmatprep.subr.mxu0 0.0
    %918 = vmatpush1.msra.mxu0 0.0
    %919 = vmatprep.subr.mxu0 0.0
    %920 = vmatpush1.msra.mxu0 0.0
    %921 = vmatprep.subr.mxu0 0.0
    %922 = vmatpush1.msra.mxu0 0.0
    %923 = vmatprep.subr.mxu0 0.0
    %924 = vmatpush1.msra.mxu0 0.0
    %925 = vmatprep.subr.mxu0 0.0
    %926 = vmatpush1.msra.mxu0 0.0
    %927 = vmatprep.subr.mxu0 0.0
    %928 = vmatpush1.msra.mxu0 %v185
    %929 = vmatprep.subr.mxu0 0.0
    %930 = vmatpush1.msra.mxu0 %v184
    %931 = vmatprep.subr.mxu0 0.0
    %932 = vmatpush1.msra.mxu0 %v183
    %933 = vmatprep.subr.mxu0 0.0
    %934 = vmatpush1.msra.mxu0 %v182
    %935 = vmatprep.subr.mxu0 0.0
    %936 = vmatpush2.msra.mxu0 0.0
    %937 = vmatprep.subr.mxu0 0.0
    %938 = vmatpush2.msra.mxu0 0.0
    %939 = vmatprep.subr.mxu0 0.0
    %940 = vmatpush2.msra.mxu0 0.0
    %941 = vmatprep.subr.mxu0 0.0
    %942 = vmatpush2.msra.mxu0 0.0
    %943 = vmatprep.subr.mxu0 0.0
    %944 = vmatpush2.msra.mxu0 0.0
    %945 = vmatprep.subr.mxu0 0.0
    %946 = vmatpush2.msra.mxu0 0.0
    %947 = vmatprep.subr.mxu0 0.0
    %948 = vmatpush2.msra.mxu0 0.0
    %949 = vmatprep.subr.mxu0 0.0
    %950 = vmatpush2.msra.mxu0 0.0
    %951 = vmatprep.subr.mxu0 0.0
    %952 = vmatpush2.msra.mxu0 0.0
    %953 = vmatprep.subr.mxu0 0.0
    %954 = vmatpush2.msra.mxu0 0.0
    %955 = vmatprep.subr.mxu0 0.0
    %956 = vmatpush2.msra.mxu0 0.0
    %957 = vmatprep.subr.mxu0 0.0
    %958 = vmatpush2.msra.mxu0 0.0
    %959 = vmatprep.subr.mxu0 0.0
    %960 = vmatpush2.msra.mxu0 0.0
    %961 = vmatprep.subr.mxu0 0.0
    %962 = vmatpush2.msra.mxu0 0.0
    %963 = vmatprep.subr.mxu0 0.0
    %964 = vmatpush2.msra.mxu0 0.0
    %965 = vmatprep.subr.mxu0 0.0
    %966 = vmatpush2.msra.mxu0 0.0
    %967 = vmatprep.mubr.f32.mxu0 0.0
    %968 = vmatmul.mubr.f32.gmra.mxu0 %v901
    %v969 = vpop.f32.mrf.mxu0
    %v970 = vadd.f32 %v191, %v969
    %v971 = vpop.f32.mrf.mxu0
    %972 = vdwg.mxu0
    %v973 = vadd.f32 %v179, %v970
    %v974 = vxor.u32 %v973, 2147483648
    %v975 = vmul.f32 %v974, 1.442695
    %v976 = vpow.pop %v975
    %v977 = vadd.f32 %v976, 1.0
    %v978 = vrcp.pop %v977
    %v979 = vmul.f32 1.0, %v978
    %981 = vrot.lane.b32.xlu0 %v970, 64
    %v982 = vpop.permute.xlu0 %981
    %v984 = vmul.f32 %v979, %v982
    %986 = vrot.lane.b32.xlu0 %v984, 64
    %v987 = vpop.permute.xlu0 %986
    %v989 = vadd.f32 %v179, %v987
    %v990 = vtanh.pop %v989
    %v991 = vsub.f32 1.0, %v979
    %993 = vrot.lane.b32.xlu0 %v990, 96
    %v994 = vpop.permute.xlu0 %993
    %v996 = vmul.f32 %v991, %v994
    %v997 = vmul.f32 %v979, %v897
    %v998 = vadd.f32 %v996, %v997
    %v999 = vld [vmem:[%s5] sm:$0xff]
    %v1000 = vld [vmem:[%s5 + $0x8] sm:$0xff]
    %v1001 = vld [vmem:[%s5 + $0x10] sm:$0xff]
    %v1002 = vld [vmem:[%s5 + $0x18] sm:$0xff]
    %v1003 = vld [vmem:[%s6] sm:$0x1]
    %v1005 = vlaneseq
    %v1006 = vshrl.u32 %v1005, 7
    %v1007 = vsub.s32 0, %v1006
    %v1008 = vrot.slane %v1003, %v1007
    %1011 = vrot.lane.b32.xlu0 %v998, 96
    %v1012 = vpop.permute.xlu0 %1011
    %v1013 = vsel %vm52, %v1012, 0
    %1015 = vmatprep.subr.mxu0 0.0
    %1016 = vmatpush1.msra.mxu0 0.0
    %1017 = vmatprep.subr.mxu0 0.0
    %1018 = vmatpush1.msra.mxu0 0.0
    %1019 = vmatprep.subr.mxu0 0.0
    %1020 = vmatpush1.msra.mxu0 0.0
    %1021 = vmatprep.subr.mxu0 0.0
    %1022 = vmatpush1.msra.mxu0 0.0
    %1023 = vmatprep.subr.mxu0 0.0
    %1024 = vmatpush1.msra.mxu0 0.0
    %1025 = vmatprep.subr.mxu0 0.0
    %1026 = vmatpush1.msra.mxu0 0.0
    %1027 = vmatprep.subr.mxu0 0.0
    %1028 = vmatpush1.msra.mxu0 0.0
    %1029 = vmatprep.subr.mxu0 0.0
    %1030 = vmatpush1.msra.mxu0 0.0
    %1031 = vmatprep.subr.mxu0 0.0
    %1032 = vmatpush1.msra.mxu0 0.0
    %1033 = vmatprep.subr.mxu0 0.0
    %1034 = vmatpush1.msra.mxu0 0.0
    %1035 = vmatprep.subr.mxu0 0.0
    %1036 = vmatpush1.msra.mxu0 0.0
    %1037 = vmatprep.subr.mxu0 0.0
    %1038 = vmatpush1.msra.mxu0 0.0
    %1039 = vmatprep.subr.mxu0 0.0
    %1040 = vmatpush1.msra.mxu0 %v1002
    %1041 = vmatprep.subr.mxu0 0.0
    %1042 = vmatpush1.msra.mxu0 %v1001
    %1043 = vmatprep.subr.mxu0 0.0
    %1044 = vmatpush1.msra.mxu0 %v1000
    %1045 = vmatprep.subr.mxu0 0.0
    %1046 = vmatpush1.msra.mxu0 %v999
    %1047 = vmatprep.subr.mxu0 0.0
    %1048 = vmatpush2.msra.mxu0 0.0
    %1049 = vmatprep.subr.mxu0 0.0
    %1050 = vmatpush2.msra.mxu0 0.0
    %1051 = vmatprep.subr.mxu0 0.0
    %1052 = vmatpush2.msra.mxu0 0.0
    %1053 = vmatprep.subr.mxu0 0.0
    %1054 = vmatpush2.msra.mxu0 0.0
    %1055 = vmatprep.subr.mxu0 0.0
    %1056 = vmatpush2.msra.mxu0 0.0
    %1057 = vmatprep.subr.mxu0 0.0
    %1058 = vmatpush2.msra.mxu0 0.0
    %1059 = vmatprep.subr.mxu0 0.0
    %1060 = vmatpush2.msra.mxu0 0.0
    %1061 = vmatprep.subr.mxu0 0.0
    %1062 = vmatpush2.msra.mxu0 0.0
    %1063 = vmatprep.subr.mxu0 0.0
    %1064 = vmatpush2.msra.mxu0 0.0
    %1065 = vmatprep.subr.mxu0 0.0
    %1066 = vmatpush2.msra.mxu0 0.0
    %1067 = vmatprep.subr.mxu0 0.0
    %1068 = vmatpush2.msra.mxu0 0.0
    %1069 = vmatprep.subr.mxu0 0.0
    %1070 = vmatpush2.msra.mxu0 0.0
    %1071 = vmatprep.subr.mxu0 0.0
    %1072 = vmatpush2.msra.mxu0 0.0
    %1073 = vmatprep.subr.mxu0 0.0
    %1074 = vmatpush2.msra.mxu0 0.0
    %1075 = vmatprep.subr.mxu0 0.0
    %1076 = vmatpush2.msra.mxu0 0.0
    %1077 = vmatprep.subr.mxu0 0.0
    %1078 = vmatpush2.msra.mxu0 0.0
    %1079 = vmatprep.mubr.f32.mxu0 0.0
    %1080 = vmatmul.mubr.f32.gmra.mxu0 %v1013
    %v1081 = vpop.f32.mrf.mxu0
    %v1082 = vadd.f32 %v1008, %v1081
    %v1083 = vpop.f32.mrf.mxu0
    %1084 = vdwg.mxu0
    %v1085 = vmax.f32 %v1082, 0.0
    %v1086 = vld [vmem:[%s7] sm:$0xff]
    %v1087 = vld [vmem:[%s7 + $0x8] sm:$0xff]
    %v1088 = vld [vmem:[%s7 + $0x10] sm:$0xff]
    %v1089 = vld [vmem:[%s7 + $0x18] sm:$0xff]
    %v1090 = vld [vmem:[%s8] sm:$0x1]
    %v1092 = vlaneseq
    %v1093 = vshrl.u32 %v1092, 7
    %v1094 = vsub.s32 0, %v1093
    %v1095 = vrot.slane %v1090, %v1094
    %v1098 = vsel %vm52, %v1085, 0
    %1100 = vmatprep.subr.mxu0 0.0
    %1101 = vmatpush1.msra.mxu0 0.0
    %1102 = vmatprep.subr.mxu0 0.0
    %1103 = vmatpush1.msra.mxu0 0.0
    %1104 = vmatprep.subr.mxu0 0.0
    %1105 = vmatpush1.msra.mxu0 0.0
    %1106 = vmatprep.subr.mxu0 0.0
    %1107 = vmatpush1.msra.mxu0 0.0
    %1108 = vmatprep.subr.mxu0 0.0
    %1109 = vmatpush1.msra.mxu0 0.0
    %1110 = vmatprep.subr.mxu0 0.0
    %1111 = vmatpush1.msra.mxu0 0.0
    %1112 = vmatprep.subr.mxu0 0.0
    %1113 = vmatpush1.msra.mxu0 0.0
    %1114 = vmatprep.subr.mxu0 0.0
    %1115 = vmatpush1.msra.mxu0 0.0
    %1116 = vmatprep.subr.mxu0 0.0
    %1117 = vmatpush1.msra.mxu0 0.0
    %1118 = vmatprep.subr.mxu0 0.0
    %1119 = vmatpush1.msra.mxu0 0.0
    %1120 = vmatprep.subr.mxu0 0.0
    %1121 = vmatpush1.msra.mxu0 0.0
    %1122 = vmatprep.subr.mxu0 0.0
    %1123 = vmatpush1.msra.mxu0 0.0
    %1124 = vmatprep.subr.mxu0 0.0
    %1125 = vmatpush1.msra.mxu0 %v1089
    %1126 = vmatprep.subr.mxu0 0.0
    %1127 = vmatpush1.msra.mxu0 %v1088
    %1128 = vmatprep.subr.mxu0 0.0
    %1129 = vmatpush1.msra.mxu0 %v1087
    %1130 = vmatprep.subr.mxu0 0.0
    %1131 = vmatpush1.msra.mxu0 %v1086
    %1132 = vmatprep.subr.mxu0 0.0
    %1133 = vmatpush2.msra.mxu0 0.0
    %1134 = vmatprep.subr.mxu0 0.0
    %1135 = vmatpush2.msra.mxu0 0.0
    %1136 = vmatprep.subr.mxu0 0.0
    %1137 = vmatpush2.msra.mxu0 0.0
    %1138 = vmatprep.subr.mxu0 0.0
    %1139 = vmatpush2.msra.mxu0 0.0
    %1140 = vmatprep.subr.mxu0 0.0
    %1141 = vmatpush2.msra.mxu0 0.0
    %1142 = vmatprep.subr.mxu0 0.0
    %1143 = vmatpush2.msra.mxu0 0.0
    %1144 = vmatprep.subr.mxu0 0.0
    %1145 = vmatpush2.msra.mxu0 0.0
    %1146 = vmatprep.subr.mxu0 0.0
    %1147 = vmatpush2.msra.mxu0 0.0
    %1148 = vmatprep.subr.mxu0 0.0
    %1149 = vmatpush2.msra.mxu0 0.0
    %1150 = vmatprep.subr.mxu0 0.0
    %1151 = vmatpush2.msra.mxu0 0.0
    %1152 = vmatprep.subr.mxu0 0.0
    %1153 = vmatpush2.msra.mxu0 0.0
    %1154 = vmatprep.subr.mxu0 0.0
    %1155 = vmatpush2.msra.mxu0 0.0
    %1156 = vmatprep.subr.mxu0 0.0
    %1157 = vmatpush2.msra.mxu0 0.0
    %1158 = vmatprep.subr.mxu0 0.0
    %1159 = vmatpush2.msra.mxu0 0.0
    %1160 = vmatprep.subr.mxu0 0.0
    %1161 = vmatpush2.msra.mxu0 0.0
    %1162 = vmatprep.subr.mxu0 0.0
    %1163 = vmatpush2.msra.mxu0 0.0
    %1164 = vmatprep.mubr.f32.mxu0 0.0
    %1165 = vmatmul.mubr.f32.gmra.mxu0 %v1098
    %v1166 = vpop.f32.mrf.mxu0
    %v1167 = vadd.f32 %v1095, %v1166
    %v1168 = vpop.f32.mrf.mxu0
    %1169 = vdwg.mxu0
    %v1170 = vtanh.pop %v1167
    %vm1171 = vcmask 130048
    %1172 = vst.msk [vmem:[#allocation2] sm:$0xff] %vm1171, %v1170
    // Predicated region
    $region38: #{tpu_custom_call.1} parent=1 // pred_check
      _
    $region39: #{tpu_custom_call.1} parent=1 // pred_check_branch
      %1174 = sbr.rel (0) target = $region41
    $region40: #{tpu_custom_call.1} parent=1 // pred_region
      %s1176 = ssub.s32 128, 128
      %1177 = vsyncadd [#allocation3], %s1176
      %s1179 = sshll.u32 [#allocation2], 4
      %s1180 = int_to_ptr.vmem [resolvable:$true] %s1179
      %1182 = dma.vmem_to_hbm [thread:$0]  %s1180, 128, %s9, [#allocation3]
    $region41: #{tpu_custom_call.1} parent=1 // pred_fallthru
      _
    // Predicated region
    $region42: #{tpu_custom_call.1} parent=1 // pred_check
      _
    $region43: #{tpu_custom_call.1} parent=1 // pred_check_branch
      %1184 = sbr.rel (0) target = $region45
    $region44: #{tpu_custom_call.1} parent=1 // pred_region
      %1185 = dma.done [#allocation3], 128
    $region45: #{tpu_custom_call.1} parent=1 // pred_fallthru
      _
    %1186 = vsyncpa [#allocation3], 1

</llo_original>
